<compile_context>
chip_gen: v7x
topology: tpu7x:2x2x1
jax: 0.10.0
libtpu: 0.0.40
codegen_flags: <defaults>
</compile_context>

<pallas_src>
import math

import jax
import jax.numpy as jnp
from jax.experimental import pallas as pl
from jax.experimental.pallas import tpu as pltpu


_LANE = 128          # lane width
_SUBLANE_BF16 = 16   # bf16 sublane packing (rows per packed vreg)


# ----------------------------- fused kernel --------------------------------

def _make_lstm_layer_kernel(num_layers, T, Bp, H, Din):
    """Kernel refs: (x, w_ih[l], w_hh[l], b[l], fc_w, fc_b, out, seq_scratch)."""
    G3 = 3 * H

    def kernel(x_ref, w_ih_ref, w_hh_ref, b_ref, fc_w_ref, fc_b_ref,
               out_ref, seq_ref):
        layer = pl.program_id(0)

        # Layer 0 seeds the persistent hidden-sequence scratch with the
        # (feature-padded) network input, so every layer uniformly reads its
        # input from seq_ref.
        @pl.when(layer == 0)
        def _():
            seq_ref[...] = x_ref[...]

        # Hoisted input projection for all T timesteps of this layer; the
        # combined bias is folded in once (outside the recurrence).
        # bf16 operands, f32 accumulation.
        xproj = (
            jnp.dot(seq_ref[...], w_ih_ref[...],
                    preferred_element_type=jnp.float32)
            + b_ref[...]
        )                                                    # (T*Bp, 4H) f32

        w_hh = w_hh_ref[...]                                 # (H, 4H) bf16

        h = jnp.zeros((Bp, H), jnp.float32)
        c = jnp.zeros((Bp, H), jnp.float32)
        h_b = jnp.zeros((Bp, H), jnp.bfloat16)
        # Fully unrolled recurrence (T static & small).  Per step: one
        # (Bp,H)@(H,4H) MXU push + one sigmoid slab + two tanh on the EUP
        # (5*Bp*H transcendentals -> the binding unit at small H).
        for t in range(T):
            gates = xproj[t * Bp:(t + 1) * Bp, :] + jnp.dot(
                h_b, w_hh, preferred_element_type=jnp.float32)
            sig = jax.nn.sigmoid(gates[:, :G3])              # [i | f | o]
            g_g = jnp.tanh(gates[:, G3:])                    # [g]
            c = sig[:, H:2 * H] * c + sig[:, :H] * g_g
            h = sig[:, 2 * H:] * jnp.tanh(c)
            h_b = h.astype(jnp.bfloat16)
            # Stream h_t straight into the persistent VMEM scratch (no
            # Python-list accumulation, no concat, bounded live ranges).
            if Din == H:
                seq_ref[pl.ds(t * Bp, Bp), :] = h_b
            else:
                seq_ref[pl.ds(t * Bp, Bp), pl.ds(0, H)] = h_b

        # FC epilogue only on the last layer; Op is a multiple of 128 so the
        # single store is an unmasked, lane-dense vst.
        @pl.when(layer == num_layers - 1)
        def _():
            out_ref[...] = (
                jnp.dot(seq_ref[...], fc_w_ref[...],
                        preferred_element_type=jnp.float32)
                + fc_b_ref[...]
            ).astype(out_ref.dtype)

    return kernel


# ------------------------------ JAX wrapper ---------------------------------

def lstm_forward(x, lstm_params, fc_w, fc_b):
    """x: (T, B, input_size) -> (T, B, output_size).  PyTorch-ordered params."""
    T, B, I = x.shape
    H = lstm_params[0][1].shape[1]        # w_hh: (4H, H)
    O = fc_w.shape[0]
    L = len(lstm_params)
    G4 = 4 * H

    # bf16 matmul operands -> pad batch to the bf16 sublane packing (16 rows).
    Bp = pl.cdiv(B, _SUBLANE_BF16) * _SUBLANE_BF16
    # Common layer-input width: layer-0 W_ih rows / x features are zero-padded
    # up to it so the stacked (L, Din, 4H) weights share one BlockSpec.
    Din = max(I, H)

    x_p = jnp.zeros((T, Bp, Din), jnp.float32).at[:, :B, :I].set(x)
    x2d = x_p.reshape(T * Bp, Din).astype(jnp.bfloat16)

    def permute_gates(m):
        # PyTorch column order [i, f, g, o] -> [i, f, o, g] so sigmoid gets one
        # contiguous 3H slab and tanh one H slab inside the kernel.
        return jnp.concatenate(
            [m[:, :2 * H], m[:, 3 * H:], m[:, 2 * H:3 * H]], axis=1)

    w_ih_l, w_hh_l, b_l = [], [], []
    for (w_ih, w_hh, b_ih, b_hh) in lstm_params:
        wi = permute_gates(jnp.transpose(w_ih))                     # (in_l, 4H)
        wi = jnp.zeros((Din, G4), jnp.float32).at[:wi.shape[0], :].set(wi)
        w_ih_l.append(wi)
        w_hh_l.append(permute_gates(jnp.transpose(w_hh)))           # (H, 4H)
        b_l.append(permute_gates((b_ih + b_hh).reshape(1, -1)))     # (1, 4H)
    w_ih_s = jnp.stack(w_ih_l).astype(jnp.bfloat16)                 # (L, Din, 4H)
    w_hh_s = jnp.stack(w_hh_l).astype(jnp.bfloat16)                 # (L, H, 4H)
    b_s = jnp.stack(b_l).astype(jnp.float32)                        # (L, 1, 4H)

    # Lane-pad the FC head to the next multiple of 128 (lane-dense store).
    Op = pl.cdiv(O, _LANE) * _LANE
    fc_w_t = (jnp.zeros((Din, Op), jnp.float32)
              .at[:H, :O].set(jnp.transpose(fc_w))).astype(jnp.bfloat16)
    fc_b_p = jnp.zeros((1, Op), jnp.float32).at[:, :O].set(fc_b)

    kernel = _make_lstm_layer_kernel(L, T, Bp, H, Din)

    flops = int(2 * L * T * Bp * Din * G4       # hoisted input projections
                + 2 * L * T * Bp * H * G4       # recurrent h @ W_hh
                + 2 * T * Bp * Din * Op)        # FC head
    transcendentals = int(5 * L * T * Bp * H)   # sigmoid(3H) + 2*tanh(H) / step
    bytes_accessed = int(x2d.size * 2 + w_ih_s.size * 2 + w_hh_s.size * 2
                         + b_s.size * 4 + fc_w_t.size * 2 + fc_b_p.size * 4
                         + T * Bp * Op * 4)

    out2d = pl.pallas_call(
        kernel,
        out_shape=jax.ShapeDtypeStruct((T * Bp, Op), jnp.float32),
        grid_spec=pltpu.PrefetchScalarGridSpec(
            num_scalar_prefetch=0,
            grid=(L,),
            in_specs=[
                pl.BlockSpec((T * Bp, Din), lambda l: (0, 0)),       # x (resident)
                pl.BlockSpec((None, Din, G4), lambda l: (l, 0, 0)),  # W_ih[l]
                pl.BlockSpec((None, H, G4), lambda l: (l, 0, 0)),    # W_hh[l]
                pl.BlockSpec((None, 1, G4), lambda l: (l, 0, 0)),    # bias[l]
                pl.BlockSpec((Din, Op), lambda l: (0, 0)),           # fc_w
                pl.BlockSpec((1, Op), lambda l: (0, 0)),             # fc_b
            ],
            out_specs=pl.BlockSpec((T * Bp, Op), lambda l: (0, 0)),
            scratch_shapes=[pltpu.VMEM((T * Bp, Din), jnp.bfloat16)],
        ),
        compiler_params=pltpu.CompilerParams(
            # The layer axis is a true sequential dependency (layer l+1 reads
            # layer l's hidden sequence from the persistent VMEM scratch).
            dimension_semantics=("arbitrary",),
            vmem_limit_bytes=32 * 1024 * 1024,
        ),
        cost_estimate=pl.CostEstimate(
            flops=flops,
            transcendentals=transcendentals,
            bytes_accessed=bytes_accessed),
    )(x2d, w_ih_s, w_hh_s, b_s, fc_w_t, fc_b_p)

    # Strip batch / lane padding.
    return out2d.reshape(T, Bp, Op)[:, :B, :O]


# ------------------------------ reference -----------------------------------

def lstm_reference(x, lstm_params, fc_w, fc_b):
    h_seq = x
    for (w_ih, w_hh, b_ih, b_hh) in lstm_params:
        T, B, _ = h_seq.shape
        H = w_hh.shape[1]
        h = jnp.zeros((B, H), jnp.float32)
        c = jnp.zeros((B, H), jnp.float32)
        outs = []
        for t in range(T):
            g = h_seq[t] @ w_ih.T + b_ih + h @ w_hh.T + b_hh
            i_g = jax.nn.sigmoid(g[:, :H])
            f_g = jax.nn.sigmoid(g[:, H:2 * H])
            g_g = jnp.tanh(g[:, 2 * H:3 * H])
            o_g = jax.nn.sigmoid(g[:, 3 * H:])
            c = f_g * c + i_g * g_g
            h = o_g * jnp.tanh(c)
            outs.append(h)
        h_seq = jnp.stack(outs)
    return h_seq @ fc_w.T + fc_b


# --------------------------------- main --------------------------------------

if __name__ == "__main__":
    # Module hyperparameters (small, consistent with the forward pass).
    output_size = 4
    input_size = 4
    hidden_size = 32
    num_layers = 2
    seq_len = 8
    batch = 2

    key = jax.random.PRNGKey(0)
    k_scale = 1.0 / math.sqrt(hidden_size)

    # Deterministic parameter init matching PyTorch's U(-1/sqrt(H), 1/sqrt(H)).
    lstm_params = []
    for layer in range(num_layers):
        in_sz = input_size if layer == 0 else hidden_size
        key, k1, k2, k3, k4 = jax.random.split(key, 5)
        w_ih = jax.random.uniform(k1, (4 * hidden_size, in_sz),
                                  jnp.float32, -k_scale, k_scale)
        w_hh = jax.random.uniform(k2, (4 * hidden_size, hidden_size),
                                  jnp.float32, -k_scale, k_scale)
        b_ih = jax.random.uniform(k3, (4 * hidden_size,),
                                  jnp.float32, -k_scale, k_scale)
        b_hh = jax.random.uniform(k4, (4 * hidden_size,),
                                  jnp.float32, -k_scale, k_scale)
        lstm_params.append((w_ih, w_hh, b_ih, b_hh))

    key, k5, k6, kx = jax.random.split(key, 4)
    fc_w = jax.random.uniform(k5, (output_size, hidden_size),
                              jnp.float32, -k_scale, k_scale)
    fc_b = jax.random.uniform(k6, (output_size,),
                              jnp.float32, -k_scale, k_scale)

    x = jax.random.normal(kx, (seq_len, batch, input_size), jnp.float32)

    out = lstm_forward(x, lstm_params, fc_w, fc_b)
    out = jax.block_until_ready(out)

    ref = lstm_reference(x, lstm_params, fc_w, fc_b)
    assert out.shape == (seq_len, batch, output_size)
    # Tolerance sized for bf16 matmul operands (state / gate math stays f32).
    assert bool(jnp.allclose(out, ref, atol=3e-2, rtol=3e-2))

    print("KERNEL_OK")
</pallas_src>

<mosaic_0001>
module attributes {stable_mosaic.version = 11 : i64} {
  func.func @kernel(%arg0: i32, %arg1: memref<128x32xbf16, #tpu.memory_space<vmem>>, %arg2: memref<1x32x128xbf16, #tpu.memory_space<vmem>>, %arg3: memref<1x32x128xbf16, #tpu.memory_space<vmem>>, %arg4: memref<1x1x128xf32, #tpu.memory_space<vmem>>, %arg5: memref<32x128xbf16, #tpu.memory_space<vmem>>, %arg6: memref<1x128xf32, #tpu.memory_space<vmem>>, %arg7: memref<128x128xf32, #tpu.memory_space<vmem>>, %arg8: memref<128x32xbf16, #tpu.memory_space<vmem>>) attributes {dimension_semantics = [#tpu.dimension_semantics<arbitrary>], iteration_bounds = array<i64: 2>, scalar_prefetch = 0 : i64, scratch_operands = 1 : i64, tpu.core_type = #tpu.core_type<tc>, window_params = [{pipeline_mode = #tpu.pipeline_mode<synchronous>, transform_indices = @transform_0, window_bounds = array<i64: 128, 32>}, {transform_indices = @transform_1, window_bounds = array<i64: 1, 32, 128>}, {transform_indices = @transform_2, window_bounds = array<i64: 1, 32, 128>}, {transform_indices = @transform_3, window_bounds = array<i64: 1, 1, 128>}, {pipeline_mode = #tpu.pipeline_mode<synchronous>, transform_indices = @transform_4, window_bounds = array<i64: 32, 128>}, {pipeline_mode = #tpu.pipeline_mode<synchronous>, transform_indices = @transform_5, window_bounds = array<i64: 1, 128>}, {pipeline_mode = #tpu.pipeline_mode<synchronous>, transform_indices = @transform_6, window_bounds = array<i64: 128, 128>}]} {
    %c0_i32 = arith.constant 0 : i32
    %0 = arith.cmpi eq, %arg0, %c0_i32 : i32
    %1 = arith.extui %0 : i1 to i32
    %c0_i32_0 = arith.constant 0 : i32
    %2 = arith.cmpi ne, %1, %c0_i32_0 : i32
    scf.if %2 {
      %c0_39 = arith.constant 0 : index
      %c0_40 = arith.constant 0 : index
      %186 = vector.load %arg1[%c0_39, %c0_40] : memref<128x32xbf16, #tpu.memory_space<vmem>>, vector<128x32xbf16>
      %c0_41 = arith.constant 0 : index
      %c0_42 = arith.constant 0 : index
      %187 = vector.load %arg8[%c0_41, %c0_42] : memref<128x32xbf16, #tpu.memory_space<vmem>>, vector<128x32xbf16>
      tpu.vector_store %arg8[%c0_41, %c0_42], %186 {strides = array<i32>} : memref<128x32xbf16, #tpu.memory_space<vmem>>, vector<128x32xbf16>,
    } else {
    }
    %c0 = arith.constant 0 : index
    %c0_1 = arith.constant 0 : index
    %3 = vector.load %arg8[%c0, %c0_1] : memref<128x32xbf16, #tpu.memory_space<vmem>>, vector<128x32xbf16>
    %c0_2 = arith.constant 0 : index
    %c0_3 = arith.constant 0 : index
    %c0_4 = arith.constant 0 : index
    %4 = vector.load %arg2[%c0_2, %c0_3, %c0_4] : memref<1x32x128xbf16, #tpu.memory_space<vmem>>, vector<1x32x128xbf16>
    %5 = vector.shape_cast %4 : vector<1x32x128xbf16> to vector<32x128xbf16>
    %cst = arith.constant dense<0.000000e+00> : vector<128x128xf32>
    %6 = tpu.matmul %3, %5, %cst {dimension_numbers = #tpu.dot_dimension_numbers<[1], [0], [0], [1], [0, 0, 1, 1], [], []>} : vector<128x32xbf16>, vector<32x128xbf16>, vector<128x128xf32> -> vector<128x128xf32>
    %c0_5 = arith.constant 0 : index
    %c0_6 = arith.constant 0 : index
    %c0_7 = arith.constant 0 : index
    %7 = vector.load %arg4[%c0_5, %c0_6, %c0_7] : memref<1x1x128xf32, #tpu.memory_space<vmem>>, vector<1x1x128xf32>
    %8 = vector.shape_cast %7 : vector<1x1x128xf32> to vector<1x128xf32>
    %9 = vector.broadcast %8 : vector<1x128xf32> to vector<128x128xf32>
    %10 = arith.addf %6, %9 : vector<128x128xf32>
    %c0_8 = arith.constant 0 : index
    %c0_9 = arith.constant 0 : index
    %c0_10 = arith.constant 0 : index
    %11 = vector.load %arg3[%c0_8, %c0_9, %c0_10] : memref<1x32x128xbf16, #tpu.memory_space<vmem>>, vector<1x32x128xbf16>
    %12 = vector.shape_cast %11 : vector<1x32x128xbf16> to vector<32x128xbf16>
    %cst_11 = arith.constant 0.000000e+00 : f32
    %13 = vector.broadcast %cst_11 : f32 to vector<16x32xf32>
    %cst_12 = arith.constant 0.000000e+00 : bf16
    %14 = vector.broadcast %cst_12 : bf16 to vector<16x32xbf16>
    %15 = vector.extract_strided_slice %10 {offsets = [0, 0], sizes = [16, 128], strides = [1, 1]} : vector<128x128xf32> to vector<16x128xf32>
    %cst_13 = arith.constant dense<0.000000e+00> : vector<16x128xf32>
    %16 = tpu.matmul %14, %12, %cst_13 {dimension_numbers = #tpu.dot_dimension_numbers<[1], [0], [0], [1], [0, 0, 1, 1], [], []>} : vector<16x32xbf16>, vector<32x128xbf16>, vector<16x128xf32> -> vector<16x128xf32>
    %17 = arith.addf %15, %16 : vector<16x128xf32>
    %18 = vector.extract_strided_slice %17 {offsets = [0, 0], sizes = [16, 96], strides = [1, 1]} : vector<16x128xf32> to vector<16x96xf32>
    %19 = arith.negf %18 : vector<16x96xf32>
    %20 = math.exp %19 : vector<16x96xf32>
    %cst_14 = arith.constant 1.000000e+00 : f32
    %21 = vector.broadcast %cst_14 : f32 to vector<16x96xf32>
    %22 = arith.addf %21, %20 : vector<16x96xf32>
    %23 = arith.divf %21, %22 : vector<16x96xf32>
    %24 = vector.extract_strided_slice %17 {offsets = [0, 96], sizes = [16, 32], strides = [1, 1]} : vector<16x128xf32> to vector<16x32xf32>
    %25 = math.tanh %24 : vector<16x32xf32>
    %26 = vector.extract_strided_slice %23 {offsets = [0, 32], sizes = [16, 32], strides = [1, 1]} : vector<16x96xf32> to vector<16x32xf32>
    %27 = arith.mulf %26, %13 : vector<16x32xf32>
    %28 = vector.extract_strided_slice %23 {offsets = [0, 0], sizes = [16, 32], strides = [1, 1]} : vector<16x96xf32> to vector<16x32xf32>
    %29 = arith.mulf %28, %25 : vector<16x32xf32>
    %30 = arith.addf %27, %29 : vector<16x32xf32>
    %31 = vector.extract_strided_slice %23 {offsets = [0, 64], sizes = [16, 32], strides = [1, 1]} : vector<16x96xf32> to vector<16x32xf32>
    %32 = math.tanh %30 : vector<16x32xf32>
    %33 = arith.mulf %31, %32 : vector<16x32xf32>
    %34 = arith.truncf %33 : vector<16x32xf32> to vector<16x32xbf16>
    %c0_15 = arith.constant 0 : index
    %c0_16 = arith.constant 0 : index
    %35 = vector.load %arg8[%c0_15, %c0_16] : memref<128x32xbf16, #tpu.memory_space<vmem>>, vector<16x32xbf16>
    tpu.vector_store %arg8[%c0_15, %c0_16], %34 {strides = array<i32>} : memref<128x32xbf16, #tpu.memory_space<vmem>>, vector<16x32xbf16>,
    %36 = vector.extract_strided_slice %10 {offsets = [16, 0], sizes = [16, 128], strides = [1, 1]} : vector<128x128xf32> to vector<16x128xf32>
    %cst_17 = arith.constant dense<0.000000e+00> : vector<16x128xf32>
    %37 = tpu.matmul %34, %12, %cst_17 {dimension_numbers = #tpu.dot_dimension_numbers<[1], [0], [0], [1], [0, 0, 1, 1], [], []>} : vector<16x32xbf16>, vector<32x128xbf16>, vector<16x128xf32> -> vector<16x128xf32>
    %38 = arith.addf %36, %37 : vector<16x128xf32>
    %39 = vector.extract_strided_slice %38 {offsets = [0, 0], sizes = [16, 96], strides = [1, 1]} : vector<16x128xf32> to vector<16x96xf32>
    %40 = arith.negf %39 : vector<16x96xf32>
    %41 = math.exp %40 : vector<16x96xf32>
    %cst_18 = arith.constant 1.000000e+00 : f32
    %42 = vector.broadcast %cst_18 : f32 to vector<16x96xf32>
    %43 = arith.addf %42, %41 : vector<16x96xf32>
    %44 = arith.divf %42, %43 : vector<16x96xf32>
    %45 = vector.extract_strided_slice %38 {offsets = [0, 96], sizes = [16, 32], strides = [1, 1]} : vector<16x128xf32> to vector<16x32xf32>
    %46 = math.tanh %45 : vector<16x32xf32>
    %47 = vector.extract_strided_slice %44 {offsets = [0, 32], sizes = [16, 32], strides = [1, 1]} : vector<16x96xf32> to vector<16x32xf32>
    %48 = arith.mulf %47, %30 : vector<16x32xf32>
    %49 = vector.extract_strided_slice %44 {offsets = [0, 0], sizes = [16, 32], strides = [1, 1]} : vector<16x96xf32> to vector<16x32xf32>
    %50 = arith.mulf %49, %46 : vector<16x32xf32>
    %51 = arith.addf %48, %50 : vector<16x32xf32>
    %52 = vector.extract_strided_slice %44 {offsets = [0, 64], sizes = [16, 32], strides = [1, 1]} : vector<16x96xf32> to vector<16x32xf32>
    %53 = math.tanh %51 : vector<16x32xf32>
    %54 = arith.mulf %52, %53 : vector<16x32xf32>
    %55 = arith.truncf %54 : vector<16x32xf32> to vector<16x32xbf16>
    %c16 = arith.constant 16 : index
    %c0_19 = arith.constant 0 : index
    %56 = vector.load %arg8[%c16, %c0_19] : memref<128x32xbf16, #tpu.memory_space<vmem>>, vector<16x32xbf16>
    tpu.vector_store %arg8[%c16, %c0_19], %55 {strides = array<i32>} : memref<128x32xbf16, #tpu.memory_space<vmem>>, vector<16x32xbf16>,
    %57 = vector.extract_strided_slice %10 {offsets = [32, 0], sizes = [16, 128], strides = [1, 1]} : vector<128x128xf32> to vector<16x128xf32>
    %cst_20 = arith.constant dense<0.000000e+00> : vector<16x128xf32>
    %58 = tpu.matmul %55, %12, %cst_20 {dimension_numbers = #tpu.dot_dimension_numbers<[1], [0], [0], [1], [0, 0, 1, 1], [], []>} : vector<16x32xbf16>, vector<32x128xbf16>, vector<16x128xf32> -> vector<16x128xf32>
    %59 = arith.addf %57, %58 : vector<16x128xf32>
    %60 = vector.extract_strided_slice %59 {offsets = [0, 0], sizes = [16, 96], strides = [1, 1]} : vector<16x128xf32> to vector<16x96xf32>
    %61 = arith.negf %60 : vector<16x96xf32>
    %62 = math.exp %61 : vector<16x96xf32>
    %cst_21 = arith.constant 1.000000e+00 : f32
    %63 = vector.broadcast %cst_21 : f32 to vector<16x96xf32>
    %64 = arith.addf %63, %62 : vector<16x96xf32>
    %65 = arith.divf %63, %64 : vector<16x96xf32>
    %66 = vector.extract_strided_slice %59 {offsets = [0, 96], sizes = [16, 32], strides = [1, 1]} : vector<16x128xf32> to vector<16x32xf32>
    %67 = math.tanh %66 : vector<16x32xf32>
    %68 = vector.extract_strided_slice %65 {offsets = [0, 32], sizes = [16, 32], strides = [1, 1]} : vector<16x96xf32> to vector<16x32xf32>
    %69 = arith.mulf %68, %51 : vector<16x32xf32>
    %70 = vector.extract_strided_slice %65 {offsets = [0, 0], sizes = [16, 32], strides = [1, 1]} : vector<16x96xf32> to vector<16x32xf32>
    %71 = arith.mulf %70, %67 : vector<16x32xf32>
    %72 = arith.addf %69, %71 : vector<16x32xf32>
    %73 = vector.extract_strided_slice %65 {offsets = [0, 64], sizes = [16, 32], strides = [1, 1]} : vector<16x96xf32> to vector<16x32xf32>
    %74 = math.tanh %72 : vector<16x32xf32>
    %75 = arith.mulf %73, %74 : vector<16x32xf32>
    %76 = arith.truncf %75 : vector<16x32xf32> to vector<16x32xbf16>
    %c32 = arith.constant 32 : index
    %c0_22 = arith.constant 0 : index
    %77 = vector.load %arg8[%c32, %c0_22] : memref<128x32xbf16, #tpu.memory_space<vmem>>, vector<16x32xbf16>
    tpu.vector_store %arg8[%c32, %c0_22], %76 {strides = array<i32>} : memref<128x32xbf16, #tpu.memory_space<vmem>>, vector<16x32xbf16>,
    %78 = vector.extract_strided_slice %10 {offsets = [48, 0], sizes = [16, 128], strides = [1, 1]} : vector<128x128xf32> to vector<16x128xf32>
    %cst_23 = arith.constant dense<0.000000e+00> : vector<16x128xf32>
    %79 = tpu.matmul %76, %12, %cst_23 {dimension_numbers = #tpu.dot_dimension_numbers<[1], [0], [0], [1], [0, 0, 1, 1], [], []>} : vector<16x32xbf16>, vector<32x128xbf16>, vector<16x128xf32> -> vector<16x128xf32>
    %80 = arith.addf %78, %79 : vector<16x128xf32>
    %81 = vector.extract_strided_slice %80 {offsets = [0, 0], sizes = [16, 96], strides = [1, 1]} : vector<16x128xf32> to vector<16x96xf32>
    %82 = arith.negf %81 : vector<16x96xf32>
    %83 = math.exp %82 : vector<16x96xf32>
    %cst_24 = arith.constant 1.000000e+00 : f32
    %84 = vector.broadcast %cst_24 : f32 to vector<16x96xf32>
    %85 = arith.addf %84, %83 : vector<16x96xf32>
    %86 = arith.divf %84, %85 : vector<16x96xf32>
    %87 = vector.extract_strided_slice %80 {offsets = [0, 96], sizes = [16, 32], strides = [1, 1]} : vector<16x128xf32> to vector<16x32xf32>
    %88 = math.tanh %87 : vector<16x32xf32>
    %89 = vector.extract_strided_slice %86 {offsets = [0, 32], sizes = [16, 32], strides = [1, 1]} : vector<16x96xf32> to vector<16x32xf32>
    %90 = arith.mulf %89, %72 : vector<16x32xf32>
    %91 = vector.extract_strided_slice %86 {offsets = [0, 0], sizes = [16, 32], strides = [1, 1]} : vector<16x96xf32> to vector<16x32xf32>
    %92 = arith.mulf %91, %88 : vector<16x32xf32>
    %93 = arith.addf %90, %92 : vector<16x32xf32>
    %94 = vector.extract_strided_slice %86 {offsets = [0, 64], sizes = [16, 32], strides = [1, 1]} : vector<16x96xf32> to vector<16x32xf32>
    %95 = math.tanh %93 : vector<16x32xf32>
    %96 = arith.mulf %94, %95 : vector<16x32xf32>
    %97 = arith.truncf %96 : vector<16x32xf32> to vector<16x32xbf16>
    %c48 = arith.constant 48 : index
    %c0_25 = arith.constant 0 : index
    %98 = vector.load %arg8[%c48, %c0_25] : memref<128x32xbf16, #tpu.memory_space<vmem>>, vector<16x32xbf16>
    tpu.vector_store %arg8[%c48, %c0_25], %97 {strides = array<i32>} : memref<128x32xbf16, #tpu.memory_space<vmem>>, vector<16x32xbf16>,
    %99 = vector.extract_strided_slice %10 {offsets = [64, 0], sizes = [16, 128], strides = [1, 1]} : vector<128x128xf32> to vector<16x128xf32>
    %cst_26 = arith.constant dense<0.000000e+00> : vector<16x128xf32>
    %100 = tpu.matmul %97, %12, %cst_26 {dimension_numbers = #tpu.dot_dimension_numbers<[1], [0], [0], [1], [0, 0, 1, 1], [], []>} : vector<16x32xbf16>, vector<32x128xbf16>, vector<16x128xf32> -> vector<16x128xf32>
    %101 = arith.addf %99, %100 : vector<16x128xf32>
    %102 = vector.extract_strided_slice %101 {offsets = [0, 0], sizes = [16, 96], strides = [1, 1]} : vector<16x128xf32> to vector<16x96xf32>
    %103 = arith.negf %102 : vector<16x96xf32>
    %104 = math.exp %103 : vector<16x96xf32>
    %cst_27 = arith.constant 1.000000e+00 : f32
    %105 = vector.broadcast %cst_27 : f32 to vector<16x96xf32>
    %106 = arith.addf %105, %104 : vector<16x96xf32>
    %107 = arith.divf %105, %106 : vector<16x96xf32>
    %108 = vector.extract_strided_slice %101 {offsets = [0, 96], sizes = [16, 32], strides = [1, 1]} : vector<16x128xf32> to vector<16x32xf32>
    %109 = math.tanh %108 : vector<16x32xf32>
    %110 = vector.extract_strided_slice %107 {offsets = [0, 32], sizes = [16, 32], strides = [1, 1]} : vector<16x96xf32> to vector<16x32xf32>
    %111 = arith.mulf %110, %93 : vector<16x32xf32>
    %112 = vector.extract_strided_slice %107 {offsets = [0, 0], sizes = [16, 32], strides = [1, 1]} : vector<16x96xf32> to vector<16x32xf32>
    %113 = arith.mulf %112, %109 : vector<16x32xf32>
    %114 = arith.addf %111, %113 : vector<16x32xf32>
    %115 = vector.extract_strided_slice %107 {offsets = [0, 64], sizes = [16, 32], strides = [1, 1]} : vector<16x96xf32> to vector<16x32xf32>
    %116 = math.tanh %114 : vector<16x32xf32>
    %117 = arith.mulf %115, %116 : vector<16x32xf32>
    %118 = arith.truncf %117 : vector<16x32xf32> to vector<16x32xbf16>
    %c64 = arith.constant 64 : index
    %c0_28 = arith.constant 0 : index
    %119 = vector.load %arg8[%c64, %c0_28] : memref<128x32xbf16, #tpu.memory_space<vmem>>, vector<16x32xbf16>
    tpu.vector_store %arg8[%c64, %c0_28], %118 {strides = array<i32>} : memref<128x32xbf16, #tpu.memory_space<vmem>>, vector<16x32xbf16>,
    %120 = vector.extract_strided_slice %10 {offsets = [80, 0], sizes = [16, 128], strides = [1, 1]} : vector<128x128xf32> to vector<16x128xf32>
    %cst_29 = arith.constant dense<0.000000e+00> : vector<16x128xf32>
    %121 = tpu.matmul %118, %12, %cst_29 {dimension_numbers = #tpu.dot_dimension_numbers<[1], [0], [0], [1], [0, 0, 1, 1], [], []>} : vector<16x32xbf16>, vector<32x128xbf16>, vector<16x128xf32> -> vector<16x128xf32>
    %122 = arith.addf %120, %121 : vector<16x128xf32>
    %123 = vector.extract_strided_slice %122 {offsets = [0, 0], sizes = [16, 96], strides = [1, 1]} : vector<16x128xf32> to vector<16x96xf32>
    %124 = arith.negf %123 : vector<16x96xf32>
    %125 = math.exp %124 : vector<16x96xf32>
    %cst_30 = arith.constant 1.000000e+00 : f32
    %126 = vector.broadcast %cst_30 : f32 to vector<16x96xf32>
    %127 = arith.addf %126, %125 : vector<16x96xf32>
    %128 = arith.divf %126, %127 : vector<16x96xf32>
    %129 = vector.extract_strided_slice %122 {offsets = [0, 96], sizes = [16, 32], strides = [1, 1]} : vector<16x128xf32> to vector<16x32xf32>
    %130 = math.tanh %129 : vector<16x32xf32>
    %131 = vector.extract_strided_slice %128 {offsets = [0, 32], sizes = [16, 32], strides = [1, 1]} : vector<16x96xf32> to vector<16x32xf32>
    %132 = arith.mulf %131, %114 : vector<16x32xf32>
    %133 = vector.extract_strided_slice %128 {offsets = [0, 0], sizes = [16, 32], strides = [1, 1]} : vector<16x96xf32> to vector<16x32xf32>
    %134 = arith.mulf %133, %130 : vector<16x32xf32>
    %135 = arith.addf %132, %134 : vector<16x32xf32>
    %136 = vector.extract_strided_slice %128 {offsets = [0, 64], sizes = [16, 32], strides = [1, 1]} : vector<16x96xf32> to vector<16x32xf32>
    %137 = math.tanh %135 : vector<16x32xf32>
    %138 = arith.mulf %136, %137 : vector<16x32xf32>
    %139 = arith.truncf %138 : vector<16x32xf32> to vector<16x32xbf16>
    %c80 = arith.constant 80 : index
    %c0_31 = arith.constant 0 : index
    %140 = vector.load %arg8[%c80, %c0_31] : memref<128x32xbf16, #tpu.memory_space<vmem>>, vector<16x32xbf16>
    tpu.vector_store %arg8[%c80, %c0_31], %139 {strides = array<i32>} : memref<128x32xbf16, #tpu.memory_space<vmem>>, vector<16x32xbf16>,
    %141 = vector.extract_strided_slice %10 {offsets = [96, 0], sizes = [16, 128], strides = [1, 1]} : vector<128x128xf32> to vector<16x128xf32>
    %cst_32 = arith.constant dense<0.000000e+00> : vector<16x128xf32>
    %142 = tpu.matmul %139, %12, %cst_32 {dimension_numbers = #tpu.dot_dimension_numbers<[1], [0], [0], [1], [0, 0, 1, 1], [], []>} : vector<16x32xbf16>, vector<32x128xbf16>, vector<16x128xf32> -> vector<16x128xf32>
    %143 = arith.addf %141, %142 : vector<16x128xf32>
    %144 = vector.extract_strided_slice %143 {offsets = [0, 0], sizes = [16, 96], strides = [1, 1]} : vector<16x128xf32> to vector<16x96xf32>
    %145 = arith.negf %144 : vector<16x96xf32>
    %146 = math.exp %145 : vector<16x96xf32>
    %cst_33 = arith.constant 1.000000e+00 : f32
    %147 = vector.broadcast %cst_33 : f32 to vector<16x96xf32>
    %148 = arith.addf %147, %146 : vector<16x96xf32>
    %149 = arith.divf %147, %148 : vector<16x96xf32>
    %150 = vector.extract_strided_slice %143 {offsets = [0, 96], sizes = [16, 32], strides = [1, 1]} : vector<16x128xf32> to vector<16x32xf32>
    %151 = math.tanh %150 : vector<16x32xf32>
    %152 = vector.extract_strided_slice %149 {offsets = [0, 32], sizes = [16, 32], strides = [1, 1]} : vector<16x96xf32> to vector<16x32xf32>
    %153 = arith.mulf %152, %135 : vector<16x32xf32>
    %154 = vector.extract_strided_slice %149 {offsets = [0, 0], sizes = [16, 32], strides = [1, 1]} : vector<16x96xf32> to vector<16x32xf32>
    %155 = arith.mulf %154, %151 : vector<16x32xf32>
    %156 = arith.addf %153, %155 : vector<16x32xf32>
    %157 = vector.extract_strided_slice %149 {offsets = [0, 64], sizes = [16, 32], strides = [1, 1]} : vector<16x96xf32> to vector<16x32xf32>
    %158 = math.tanh %156 : vector<16x32xf32>
    %159 = arith.mulf %157, %158 : vector<16x32xf32>
    %160 = arith.truncf %159 : vector<16x32xf32> to vector<16x32xbf16>
    %c96 = arith.constant 96 : index
    %c0_34 = arith.constant 0 : index
    %161 = vector.load %arg8[%c96, %c0_34] : memref<128x32xbf16, #tpu.memory_space<vmem>>, vector<16x32xbf16>
    tpu.vector_store %arg8[%c96, %c0_34], %160 {strides = array<i32>} : memref<128x32xbf16, #tpu.memory_space<vmem>>, vector<16x32xbf16>,
    %162 = vector.extract_strided_slice %10 {offsets = [112, 0], sizes = [16, 128], strides = [1, 1]} : vector<128x128xf32> to vector<16x128xf32>
    %cst_35 = arith.constant dense<0.000000e+00> : vector<16x128xf32>
    %163 = tpu.matmul %160, %12, %cst_35 {dimension_numbers = #tpu.dot_dimension_numbers<[1], [0], [0], [1], [0, 0, 1, 1], [], []>} : vector<16x32xbf16>, vector<32x128xbf16>, vector<16x128xf32> -> vector<16x128xf32>
    %164 = arith.addf %162, %163 : vector<16x128xf32>
    %165 = vector.extract_strided_slice %164 {offsets = [0, 0], sizes = [16, 96], strides = [1, 1]} : vector<16x128xf32> to vector<16x96xf32>
    %166 = arith.negf %165 : vector<16x96xf32>
    %167 = math.exp %166 : vector<16x96xf32>
    %cst_36 = arith.constant 1.000000e+00 : f32
    %168 = vector.broadcast %cst_36 : f32 to vector<16x96xf32>
    %169 = arith.addf %168, %167 : vector<16x96xf32>
    %170 = arith.divf %168, %169 : vector<16x96xf32>
    %171 = vector.extract_strided_slice %164 {offsets = [0, 96], sizes = [16, 32], strides = [1, 1]} : vector<16x128xf32> to vector<16x32xf32>
    %172 = math.tanh %171 : vector<16x32xf32>
    %173 = vector.extract_strided_slice %170 {offsets = [0, 32], sizes = [16, 32], strides = [1, 1]} : vector<16x96xf32> to vector<16x32xf32>
    %174 = arith.mulf %173, %156 : vector<16x32xf32>
    %175 = vector.extract_strided_slice %170 {offsets = [0, 0], sizes = [16, 32], strides = [1, 1]} : vector<16x96xf32> to vector<16x32xf32>
    %176 = arith.mulf %175, %172 : vector<16x32xf32>
    %177 = arith.addf %174, %176 : vector<16x32xf32>
    %178 = vector.extract_strided_slice %170 {offsets = [0, 64], sizes = [16, 32], strides = [1, 1]} : vector<16x96xf32> to vector<16x32xf32>
    %179 = math.tanh %177 : vector<16x32xf32>
    %180 = arith.mulf %178, %179 : vector<16x32xf32>
    %181 = arith.truncf %180 : vector<16x32xf32> to vector<16x32xbf16>
    %c112 = arith.constant 112 : index
    %c0_37 = arith.constant 0 : index
    %182 = vector.load %arg8[%c112, %c0_37] : memref<128x32xbf16, #tpu.memory_space<vmem>>, vector<16x32xbf16>
    tpu.vector_store %arg8[%c112, %c0_37], %181 {strides = array<i32>} : memref<128x32xbf16, #tpu.memory_space<vmem>>, vector<16x32xbf16>,
    %c1_i32 = arith.constant 1 : i32
    %183 = arith.cmpi eq, %arg0, %c1_i32 : i32
    %184 = arith.extui %183 : i1 to i32
    %c0_i32_38 = arith.constant 0 : i32
    %185 = arith.cmpi ne, %184, %c0_i32_38 : i32
    scf.if %185 {
      %c0_39 = arith.constant 0 : index
      %c0_40 = arith.constant 0 : index
      %186 = vector.load %arg8[%c0_39, %c0_40] : memref<128x32xbf16, #tpu.memory_space<vmem>>, vector<128x32xbf16>
      %c0_41 = arith.constant 0 : index
      %c0_42 = arith.constant 0 : index
      %187 = vector.load %arg5[%c0_41, %c0_42] : memref<32x128xbf16, #tpu.memory_space<vmem>>, vector<32x128xbf16>
      %cst_43 = arith.constant dense<0.000000e+00> : vector<128x128xf32>
      %188 = tpu.matmul %186, %187, %cst_43 {dimension_numbers = #tpu.dot_dimension_numbers<[1], [0], [0], [1], [0, 0, 1, 1], [], []>} : vector<128x32xbf16>, vector<32x128xbf16>, vector<128x128xf32> -> vector<128x128xf32>
      %c0_44 = arith.constant 0 : index
      %c0_45 = arith.constant 0 : index
      %189 = vector.load %arg6[%c0_44, %c0_45] : memref<1x128xf32, #tpu.memory_space<vmem>>, vector<1x128xf32>
      %190 = vector.broadcast %189 : vector<1x128xf32> to vector<128x128xf32>
      %191 = arith.addf %188, %190 : vector<128x128xf32>
      %c0_46 = arith.constant 0 : index
      %c0_47 = arith.constant 0 : index
      %192 = vector.load %arg7[%c0_46, %c0_47] : memref<128x128xf32, #tpu.memory_space<vmem>>, vector<128x128xf32>
      tpu.vector_store %arg7[%c0_46, %c0_47], %191 {strides = array<i32>} : memref<128x128xf32, #tpu.memory_space<vmem>>, vector<128x128xf32>,
    } else {
    }
    return
  }
  func.func @transform_0(%arg0: i32) -> (i32, i32) {
    %c0_i32 = arith.constant 0 : i32
    %c0_i32_0 = arith.constant 0 : i32
    %c0_i32_1 = arith.constant 0 : i32
    return %c0_i32, %c0_i32_0 : i32, i32
  }
  func.func @transform_1(%arg0: i32) -> (i32, i32, i32) {
    %c0_i32 = arith.constant 0 : i32
    %c0_i32_0 = arith.constant 0 : i32
    %c0_i32_1 = arith.constant 0 : i32
    return %arg0, %c0_i32, %c0_i32_0 : i32, i32, i32
  }
  func.func @transform_2(%arg0: i32) -> (i32, i32, i32) {
    %c0_i32 = arith.constant 0 : i32
    %c0_i32_0 = arith.constant 0 : i32
    %c0_i32_1 = arith.constant 0 : i32
    return %arg0, %c0_i32, %c0_i32_0 : i32, i32, i32
  }
  func.func @transform_3(%arg0: i32) -> (i32, i32, i32) {
    %c0_i32 = arith.constant 0 : i32
    %c0_i32_0 = arith.constant 0 : i32
    %c0_i32_1 = arith.constant 0 : i32
    return %arg0, %c0_i32, %c0_i32_0 : i32, i32, i32
  }
  func.func @transform_4(%arg0: i32) -> (i32, i32) {
    %c0_i32 = arith.constant 0 : i32
    %c0_i32_0 = arith.constant 0 : i32
    %c0_i32_1 = arith.constant 0 : i32
    return %c0_i32, %c0_i32_0 : i32, i32
  }
  func.func @transform_5(%arg0: i32) -> (i32, i32) {
    %c0_i32 = arith.constant 0 : i32
    %c0_i32_0 = arith.constant 0 : i32
    %c0_i32_1 = arith.constant 0 : i32
    return %c0_i32, %c0_i32_0 : i32, i32
  }
  func.func @transform_6(%arg0: i32) -> (i32, i32) {
    %c0_i32 = arith.constant 0 : i32
    %c0_i32_0 = arith.constant 0 : i32
    %c0_i32_1 = arith.constant 0 : i32
    return %c0_i32, %c0_i32_0 : i32, i32
  }
}

</mosaic_0001>

<llo_original>
// kernel: tpu_custom_call.1
$region0: #{tpu_custom_call.1}
  #allocation0 [shape = 'u32[]', space=smem, size = 0x4, offset = 0x4, fixed_abs, tag = 'smem constant byte address 0x4 - core index']
  #allocation1 [shape = 'u32[144,128]{1,0:T(1,128)}', space=vmem, size = 0x12000, scoped, tag = 'internal scratch']
  #allocation2 [shape = 'bf16[128,32]{1,0:T(16,128)(2,1)}', space=vmem, size = 0x8000, scoped, tag = 'scratch operand']
  %s0 = inlined_call_operand.vmem [shape: bf16[128,32], index: 0, kind: input, shape index: {}]
  %s1 = inlined_call_operand.vmem [shape: bf16[2,32,128], index: 1, kind: input, shape index: {}]
  %s2 = inlined_call_operand.vmem [shape: bf16[2,32,128], index: 2, kind: input, shape index: {}]
  %s3 = inlined_call_operand.vmem [shape: f32[2,1,128], index: 3, kind: input, shape index: {}]
  %s4 = inlined_call_operand.vmem [shape: bf16[32,128], index: 4, kind: input, shape index: {}]
  %s5 = inlined_call_operand.vmem [shape: f32[1,128], index: 5, kind: input, shape index: {}]
  %s6 = inlined_call_operand.hbm [shape: f32[128,128], index: 6, kind: output, shape index: {}]
  %s7 = sld [smem:[#allocation0]]
  $region65: #{tpu_custom_call.1} parent=0
    _
  %s9 = ssub.s32 1, %s7
  %s10 = scalar_select 0, %s9, %s7
  $region1: #{tpu_custom_call.1} parent=0
    #allocation3 [shape = 'u8[65536]{0}', space=vmem, size = 0x10000, scoped, tag = 'output window, operand 0, single buffered']
    #allocation4 [shape = 's32[2]{0}', space=sflag, size = 0x8, scoped, tag = 'scoped memory for tpu_custom_call.1']
    %11 = vsyncpa [#allocation4], 0
    loop: start=0, step=1, limit=4
    $region2: #{tpu_custom_call.1} parent=1 // loop_pre_header
      _
    $region3: #{tpu_custom_call.1} parent=1 // loop_header
      %s13 = sphi 0, %s17
      %p14 = scmp.ge.s32.totalorder %s13, 4
      %s21 = sphi 0, %s21
      %s23 = sphi 0, %s21
      %s24 = sphi 0, %s23
      %s38 = sphi 0, %s24
      %s44 = sphi 0, %s46
      %s47 = sphi 0, %s44
      %s48 = sphi 0, %s47
      %s64 = sphi 0, %s48
      %s70 = sphi 0, %s72
      %s73 = sphi 0, %s70
      %s74 = sphi 0, %s73
      %s90 = sphi 0, %s74
      %s96 = sphi 0, %s98
      %s99 = sphi 0, %s96
      %s100 = sphi 0, %s99
      %s116 = sphi 0, %s100
      %s120 = sphi 0, %s120
      %s122 = sphi 0, %s120
      %s123 = sphi 0, %s122
      %s137 = sphi 0, %s123
      %s141 = sphi 0, %s141
      %s143 = sphi 0, %s141
      %s144 = sphi 0, %s143
      %s158 = sphi 0, %s144
      %s162 = sphi 0, %s162
      %s164 = sphi 0, %s162
      %s165 = sphi 0, %s164
      %s179 = sphi 0, %s165
    $region4: #{tpu_custom_call.1} parent=1 // loop_header_branch
      %16 = sbr.rel (%p14) target = $region8
    $region5: #{tpu_custom_call.1} parent=1 // loop_body
      %s18 = ssub.s32 %s13, 1
      %s19 = ssub.s32 %s13, 2
      %s20 = sadd.s32 %s13, 1
      %s22 = sadd.s32 %s21, 1
      %p25 = scmp.eq.s32.totalorder %s13, 1
      %p26 = scmp.ne.s32.totalorder %s21, %s23
      %p27 = scmp.eq.s32.totalorder %s13, 0
      %p28 = por %p26, %p27
      %p29 = scmp.ne.s32.totalorder %s21, %s23
      %p30 = scmp.eq.s32.totalorder %s18, 1
      %p31 = por %p29, %p30
      %p32 = scmp.ne.s32.totalorder %s23, %s24
      %p33 = scmp.eq.s32.totalorder %s18, 0
      %p34 = por %p32, %p33
      %p35 = scmp.ne.s32.totalorder %s23, %s24
      %p36 = scmp.eq.s32.totalorder %s19, 1
      %p37 = por %p35, %p36
      %p39 = scmp.ne.s32.totalorder %s24, %s38
      %p40 = scmp.eq.s32.totalorder %s19, 0
      %p41 = por %p39, %p40
      %s42 = ssub.s32 %s13, %s20
      %p43 = scmp.eq.s32.totalorder %s42, 0
      %s45 = sadd.s32 %s44, 1
      %s46 = scalar_select %p43, %s44, %s45
      %p49 = pneg %p43
      %p50 = scmp.eq.s32.totalorder %s13, 1
      %p51 = por %p49, %p50
      %p52 = scmp.ne.s32.totalorder %s44, %s47
      %p53 = scmp.eq.s32.totalorder %s13, 0
      %p54 = por %p52, %p53
      %p55 = scmp.ne.s32.totalorder %s44, %s47
      %p56 = scmp.eq.s32.totalorder %s18, 1
      %p57 = por %p55, %p56
      %p58 = scmp.ne.s32.totalorder %s47, %s48
      %p59 = scmp.eq.s32.totalorder %s18, 0
      %p60 = por %p58, %p59
      %p61 = scmp.ne.s32.totalorder %s47, %s48
      %p62 = scmp.eq.s32.totalorder %s19, 1
      %p63 = por %p61, %p62
      %p65 = scmp.ne.s32.totalorder %s48, %s64
      %p66 = scmp.eq.s32.totalorder %s19, 0
      %p67 = por %p65, %p66
      %s68 = ssub.s32 %s13, %s20
      %p69 = scmp.eq.s32.totalorder %s68, 0
      %s71 = sadd.s32 %s70, 1
      %s72 = scalar_select %p69, %s70, %s71
      %p75 = pneg %p69
      %p76 = scmp.eq.s32.totalorder %s13, 1
      %p77 = por %p75, %p76
      %p78 = scmp.ne.s32.totalorder %s70, %s73
      %p79 = scmp.eq.s32.totalorder %s13, 0
      %p80 = por %p78, %p79
      %p81 = scmp.ne.s32.totalorder %s70, %s73
      %p82 = scmp.eq.s32.totalorder %s18, 1
      %p83 = por %p81, %p82
      %p84 = scmp.ne.s32.totalorder %s73, %s74
      %p85 = scmp.eq.s32.totalorder %s18, 0
      %p86 = por %p84, %p85
      %p87 = scmp.ne.s32.totalorder %s73, %s74
      %p88 = scmp.eq.s32.totalorder %s19, 1
      %p89 = por %p87, %p88
      %p91 = scmp.ne.s32.totalorder %s74, %s90
      %p92 = scmp.eq.s32.totalorder %s19, 0
      %p93 = por %p91, %p92
      %s94 = ssub.s32 %s13, %s20
      %p95 = scmp.eq.s32.totalorder %s94, 0
      %s97 = sadd.s32 %s96, 1
      %s98 = scalar_select %p95, %s96, %s97
      %p101 = pneg %p95
      %p102 = scmp.eq.s32.totalorder %s13, 1
      %p103 = por %p101, %p102
      %p104 = scmp.ne.s32.totalorder %s96, %s99
      %p105 = scmp.eq.s32.totalorder %s13, 0
      %p106 = por %p104, %p105
      %p107 = scmp.ne.s32.totalorder %s96, %s99
      %p108 = scmp.eq.s32.totalorder %s18, 1
      %p109 = por %p107, %p108
      %p110 = scmp.ne.s32.totalorder %s99, %s100
      %p111 = scmp.eq.s32.totalorder %s18, 0
      %p112 = por %p110, %p111
      %p113 = scmp.ne.s32.totalorder %s99, %s100
      %p114 = scmp.eq.s32.totalorder %s19, 1
      %p115 = por %p113, %p114
      %p117 = scmp.ne.s32.totalorder %s100, %s116
      %p118 = scmp.eq.s32.totalorder %s19, 0
      %p119 = por %p117, %p118
      %s121 = sadd.s32 %s120, 1
      %p124 = scmp.eq.s32.totalorder %s13, 1
      %p125 = scmp.ne.s32.totalorder %s120, %s122
      %p126 = scmp.eq.s32.totalorder %s13, 0
      %p127 = por %p125, %p126
      %p128 = scmp.ne.s32.totalorder %s120, %s122
      %p129 = scmp.eq.s32.totalorder %s18, 1
      %p130 = por %p128, %p129
      %p131 = scmp.ne.s32.totalorder %s122, %s123
      %p132 = scmp.eq.s32.totalorder %s18, 0
      %p133 = por %p131, %p132
      %p134 = scmp.ne.s32.totalorder %s122, %s123
      %p135 = scmp.eq.s32.totalorder %s19, 1
      %p136 = por %p134, %p135
      %p138 = scmp.ne.s32.totalorder %s123, %s137
      %p139 = scmp.eq.s32.totalorder %s19, 0
      %p140 = por %p138, %p139
      %s142 = sadd.s32 %s141, 1
      %p145 = scmp.eq.s32.totalorder %s13, 1
      %p146 = scmp.ne.s32.totalorder %s141, %s143
      %p147 = scmp.eq.s32.totalorder %s13, 0
      %p148 = por %p146, %p147
      %p149 = scmp.ne.s32.totalorder %s141, %s143
      %p150 = scmp.eq.s32.totalorder %s18, 1
      %p151 = por %p149, %p150
      %p152 = scmp.ne.s32.totalorder %s143, %s144
      %p153 = scmp.eq.s32.totalorder %s18, 0
      %p154 = por %p152, %p153
      %p155 = scmp.ne.s32.totalorder %s143, %s144
      %p156 = scmp.eq.s32.totalorder %s19, 1
      %p157 = por %p155, %p156
      %p159 = scmp.ne.s32.totalorder %s144, %s158
      %p160 = scmp.eq.s32.totalorder %s19, 0
      %p161 = por %p159, %p160
      %s163 = sadd.s32 %s162, 1
      %p166 = scmp.eq.s32.totalorder %s13, 1
      %p167 = scmp.ne.s32.totalorder %s162, %s164
      %p168 = scmp.eq.s32.totalorder %s13, 0
      %p169 = por %p167, %p168
      %p170 = scmp.ne.s32.totalorder %s162, %s164
      %p171 = scmp.eq.s32.totalorder %s18, 1
      %p172 = por %p170, %p171
      %p173 = scmp.ne.s32.totalorder %s164, %s165
      %p174 = scmp.eq.s32.totalorder %s18, 0
      %p175 = por %p173, %p174
      %p176 = scmp.ne.s32.totalorder %s164, %s165
      %p177 = scmp.eq.s32.totalorder %s19, 1
      %p178 = por %p176, %p177
      %p180 = scmp.ne.s32.totalorder %s165, %s179
      %p181 = scmp.eq.s32.totalorder %s19, 0
      %p182 = por %p180, %p181
      %p183 = scmp.le.s32.totalorder 1, %s13
      %p184 = scmp.lt.s32.totalorder %s13, 3
      %p185 = pnand %p183, %p184
      %p186 = pneg %p185
      // Predicated region
      $region9: #{tpu_custom_call.1} parent=5 // pred_check
        _
      $region10: #{tpu_custom_call.1} parent=5 // pred_check_branch
        %188 = sbr.rel (%p185) target = $region12
      $region11: #{tpu_custom_call.1} parent=5 // pred_region
        %s189 = ssub.s32 %s13, 1
        // Predicated region
        $region13: #{tpu_custom_call.1} parent=11 // pred_check
          %p190 = pneg %p34
        $region14: #{tpu_custom_call.1} parent=11 // pred_check_branch
          %192 = sbr.rel (%p190) target = $region16
        $region15: #{tpu_custom_call.1} parent=11 // pred_region
          _
        $region16: #{tpu_custom_call.1} parent=11 // pred_fallthru
          _
        // Predicated region
        $region17: #{tpu_custom_call.1} parent=11 // pred_check
          %p193 = pneg %p133
        $region18: #{tpu_custom_call.1} parent=11 // pred_check_branch
          %195 = sbr.rel (%p193) target = $region20
        $region19: #{tpu_custom_call.1} parent=11 // pred_region
          _
        $region20: #{tpu_custom_call.1} parent=11 // pred_fallthru
          _
        // Predicated region
        $region21: #{tpu_custom_call.1} parent=11 // pred_check
          %p196 = pneg %p154
        $region22: #{tpu_custom_call.1} parent=11 // pred_check_branch
          %198 = sbr.rel (%p196) target = $region24
        $region23: #{tpu_custom_call.1} parent=11 // pred_region
          _
        $region24: #{tpu_custom_call.1} parent=11 // pred_fallthru
          _
      $region12: #{tpu_custom_call.1} parent=5 // pred_fallthru
        _
      %p199 = scmp.lt.s32.totalorder %s13, 2
      // Predicated region
      $region25: #{tpu_custom_call.1} parent=5 // pred_check
        %p200 = pneg %p199
      $region26: #{tpu_custom_call.1} parent=5 // pred_check_branch
        %202 = sbr.rel (%p200) target = $region28
      $region27: #{tpu_custom_call.1} parent=5 // pred_region
        // Predicated region
        $region29: #{tpu_custom_call.1} parent=27 // pred_check
          %p203 = pneg %p54
        $region30: #{tpu_custom_call.1} parent=27 // pred_check_branch
          %205 = sbr.rel (%p203) target = $region32
        $region31: #{tpu_custom_call.1} parent=27 // pred_region
          %p206 = scmp.lt.s32.totalorder %s13, 1
          %s207 = scalar_select %p206, %s13, 1
          %s208 = smul.addr %s207, 4
          %s209 = smul.addr %s208, 4
          %s210 = scalar_lea.vmem %s1, %s209
        $region32: #{tpu_custom_call.1} parent=27 // pred_fallthru
          _
        // Predicated region
        $region33: #{tpu_custom_call.1} parent=27 // pred_check
          %p211 = pneg %p80
        $region34: #{tpu_custom_call.1} parent=27 // pred_check_branch
          %213 = sbr.rel (%p211) target = $region36
        $region35: #{tpu_custom_call.1} parent=27 // pred_region
          %p214 = scmp.lt.s32.totalorder %s13, 1
          %s215 = scalar_select %p214, %s13, 1
          %s216 = smul.addr %s215, 4
          %s217 = smul.addr %s216, 4
          %s218 = scalar_lea.vmem %s2, %s217
        $region36: #{tpu_custom_call.1} parent=27 // pred_fallthru
          _
        // Predicated region
        $region37: #{tpu_custom_call.1} parent=27 // pred_check
          %p219 = pneg %p106
        $region38: #{tpu_custom_call.1} parent=27 // pred_check_branch
          %221 = sbr.rel (%p219) target = $region40
        $region39: #{tpu_custom_call.1} parent=27 // pred_region
          %p222 = scmp.lt.s32.totalorder %s13, 1
          %s223 = scalar_select %p222, %s13, 1
          %s224 = scalar_lea.vmem %s3, %s223
        $region40: #{tpu_custom_call.1} parent=27 // pred_fallthru
          _
      $region28: #{tpu_custom_call.1} parent=5 // pred_fallthru
        _
      %p225 = scmp.le.s32.totalorder 1, %s13
      %p226 = scmp.lt.s32.totalorder %s13, 3
      %p227 = pnand %p225, %p226
      %p228 = pneg %p227
      // Predicated region
      $region41: #{tpu_custom_call.1} parent=5 // pred_check
        _
      $region42: #{tpu_custom_call.1} parent=5 // pred_check_branch
        %230 = sbr.rel (%p227) target = $region44
      $region43: #{tpu_custom_call.1} parent=5 // pred_region
        %s231 = ssub.s32 %s13, 1
        %p232 = pneg %p34
        %p233 = pneg %p31
        %p234 = scmp.lt.s32.totalorder %s18, 1
        %s235 = scalar_select %p234, %s18, 1
        %s236 = smul.addr %s235, 4
        %s237 = smul.addr %s236, 4
        %s238 = scalar_lea.vmem %s1, %s237
        %p239 = pneg %p60
        %p240 = pneg %p57
        %p241 = scmp.lt.s32.totalorder %s18, 1
        %s242 = scalar_select %p241, %s18, 1
        %s243 = smul.addr %s242, 4
        %s244 = smul.addr %s243, 4
        %s245 = scalar_lea.vmem %s2, %s244
        %p246 = pneg %p86
        %p247 = pneg %p83
        %p248 = scmp.lt.s32.totalorder %s18, 1
        %s249 = scalar_select %p248, %s18, 1
        %s250 = scalar_lea.vmem %s3, %s249
        %p251 = pneg %p112
        %p252 = pneg %p109
        %p253 = pneg %p133
        %p254 = pneg %p130
        %p255 = pneg %p154
        %p256 = pneg %p151
        %p257 = pneg %p175
        %p258 = pneg %p172
        %p259 = scmp.lt.s32.totalorder %s18, 1
        %s260 = scalar_select %p259, %s18, 1
        %s261 = smul.addr %s260, 4
        %s262 = smul.addr %s261, 4
        %s263 = scalar_lea.vmem %s1, %s262
        %p264 = scmp.lt.s32.totalorder %s18, 1
        %s265 = scalar_select %p264, %s18, 1
        %s266 = smul.addr %s265, 4
        %s267 = smul.addr %s266, 4
        %s268 = scalar_lea.vmem %s2, %s267
        %p269 = scmp.lt.s32.totalorder %s18, 1
        %s270 = scalar_select %p269, %s18, 1
        %s271 = scalar_lea.vmem %s3, %s270
        %p273 = scmp.eq.s32.totalorder %s18, 0
        // Predicated region
        $region45: #{tpu_custom_call.1} parent=43 // pred_check
          %p274 = pneg %p273
        $region46: #{tpu_custom_call.1} parent=43 // pred_check_branch
          %276 = sbr.rel (%p274) target = $region48
        $region47: #{tpu_custom_call.1} parent=43 // pred_region
          %v277 = vld [vmem:[%s0] sm:$0xf]
          %v278 = vld [vmem:[%s0 + $0x4] sm:$0xf]
          %v279 = vld [vmem:[%s0 + $0x8] sm:$0xf]
          %v280 = vld [vmem:[%s0 + $0xc] sm:$0xf]
          %v281 = vld [vmem:[%s0 + $0x10] sm:$0xf]
          %v282 = vld [vmem:[%s0 + $0x14] sm:$0xf]
          %v283 = vld [vmem:[%s0 + $0x18] sm:$0xf]
          %v284 = vld [vmem:[%s0 + $0x1c] sm:$0xf]
          %v285 = vld [vmem:[%s0 + $0x20] sm:$0xf]
          %v286 = vld [vmem:[%s0 + $0x24] sm:$0xf]
          %v287 = vld [vmem:[%s0 + $0x28] sm:$0xf]
          %v288 = vld [vmem:[%s0 + $0x2c] sm:$0xf]
          %v289 = vld [vmem:[%s0 + $0x30] sm:$0xf]
          %v290 = vld [vmem:[%s0 + $0x34] sm:$0xf]
          %v291 = vld [vmem:[%s0 + $0x38] sm:$0xf]
          %v292 = vld [vmem:[%s0 + $0x3c] sm:$0xf]
          %v309 = vunpack.c.l.b16 %v277
          %v310 = vunpack.c.l.b16 %v278
          %v311 = vunpack.c.l.b16 %v279
          %v312 = vunpack.c.l.b16 %v280
          %v313 = vunpack.c.l.b16 %v281
          %v314 = vunpack.c.l.b16 %v282
          %v315 = vunpack.c.l.b16 %v283
          %v316 = vunpack.c.l.b16 %v284
          %v317 = vunpack.c.l.b16 %v285
          %v318 = vunpack.c.l.b16 %v286
          %v319 = vunpack.c.l.b16 %v287
          %v320 = vunpack.c.l.b16 %v288
          %v321 = vunpack.c.l.b16 %v289
          %v322 = vunpack.c.l.b16 %v290
          %v323 = vunpack.c.l.b16 %v291
          %v324 = vunpack.c.l.b16 %v292
          %v325 = vpack.c.b16 %v310, %v309
          %v326 = vpack.c.b16 %v312, %v311
          %v327 = vpack.c.b16 %v314, %v313
          %v328 = vpack.c.b16 %v316, %v315
          %v329 = vpack.c.b16 %v318, %v317
          %v330 = vpack.c.b16 %v320, %v319
          %v331 = vpack.c.b16 %v322, %v321
          %v332 = vpack.c.b16 %v324, %v323
          %vm341 = vcmask 261120
          %342 = vst.msk [vmem:[#allocation2] sm:$0xff] %vm341, %v325
          %343 = vst.msk [vmem:[#allocation2 + $0x8] sm:$0xff] %vm341, %v326
          %344 = vst.msk [vmem:[#allocation2 + $0x10] sm:$0xff] %vm341, %v327
          %345 = vst.msk [vmem:[#allocation2 + $0x18] sm:$0xff] %vm341, %v328
          %346 = vst.msk [vmem:[#allocation2 + $0x20] sm:$0xff] %vm341, %v329
          %347 = vst.msk [vmem:[#allocation2 + $0x28] sm:$0xff] %vm341, %v330
          %348 = vst.msk [vmem:[#allocation2 + $0x30] sm:$0xff] %vm341, %v331
          %349 = vst.msk [vmem:[#allocation2 + $0x38] sm:$0xff] %vm341, %v332
        $region48: #{tpu_custom_call.1} parent=43 // pred_fallthru
          _
        %v350 = vld [vmem:[#allocation2] sm:$0xff]
        %v351 = vld [vmem:[#allocation2 + $0x8] sm:$0xff]
        %v352 = vld [vmem:[#allocation2 + $0x10] sm:$0xff]
        %v353 = vld [vmem:[#allocation2 + $0x18] sm:$0xff]
        %v354 = vld [vmem:[#allocation2 + $0x20] sm:$0xff]
        %v355 = vld [vmem:[#allocation2 + $0x28] sm:$0xff]
        %v356 = vld [vmem:[#allocation2 + $0x30] sm:$0xff]
        %v357 = vld [vmem:[#allocation2 + $0x38] sm:$0xff]
        %v358 = vld [vmem:[%s263] sm:$0xf]
        %v359 = vld [vmem:[%s263 + $0x4] sm:$0xf]
        %v360 = vld [vmem:[%s263 + $0x8] sm:$0xf]
        %v361 = vld [vmem:[%s263 + $0xc] sm:$0xf]
        %v362 = vld [vmem:[%s271] sm:$0x1]
        %v364 = vlaneseq
        %v365 = vshrl.u32 %v364, 7
        %v366 = vsub.s32 0, %v365
        %v367 = vrot.slane %v362, %v366
        %v373 = vunpack.c.l.b16 %v358
        %v374 = vunpack.c.l.b16 %v359
        %v375 = vunpack.c.l.b16 %v360
        %v376 = vunpack.c.l.b16 %v361
        %v377 = vpack.c.b16 %v374, %v373
        %v378 = vpack.c.b16 %v376, %v375
        %vm381 = vcmask 261120
        %v383 = vsel %vm381, %v350, 0
        %v386 = vsel %vm381, %v351, 0
        %v389 = vsel %vm381, %v352, 0
        %v392 = vsel %vm381, %v353, 0
        %v395 = vsel %vm381, %v354, 0
        %v398 = vsel %vm381, %v355, 0
        %v401 = vsel %vm381, %v356, 0
        %v404 = vsel %vm381, %v357, 0
        %406 = vmatprep.subr.bf16.mxu0 0
        %407 = vmatpush1.bf16.msra.mxu0 %v377
        %408 = vmatprep.subr.bf16.mxu0 0
        %409 = vmatpush1.bf16.msra.mxu0 %v378
        %410 = vmatprep.subr.bf16.mxu0 0
        %411 = vmatpush1.bf16.msra.mxu0 0
        %412 = vmatprep.subr.bf16.mxu0 0
        %413 = vmatpush1.bf16.msra.mxu0 0
        %414 = vmatprep.subr.bf16.mxu0 0
        %415 = vmatpush1.bf16.msra.mxu0 0
        %416 = vmatprep.subr.bf16.mxu0 0
        %417 = vmatpush1.bf16.msra.mxu0 0
        %418 = vmatprep.subr.bf16.mxu0 0
        %419 = vmatpush1.bf16.msra.mxu0 0
        %420 = vmatprep.subr.bf16.mxu0 0
        %421 = vmatpush1.bf16.msra.mxu0 0
        %422 = vmatprep.subr.bf16.mxu0 0
        %423 = vmatpush1.bf16.msra.mxu0 0
        %424 = vmatprep.subr.bf16.mxu0 0
        %425 = vmatpush1.bf16.msra.mxu0 0
        %426 = vmatprep.subr.bf16.mxu0 0
        %427 = vmatpush1.bf16.msra.mxu0 0
        %428 = vmatprep.subr.bf16.mxu0 0
        %429 = vmatpush1.bf16.msra.mxu0 0
        %430 = vmatprep.subr.bf16.mxu0 0
        %431 = vmatpush1.bf16.msra.mxu0 0
        %432 = vmatprep.subr.bf16.mxu0 0
        %433 = vmatpush1.bf16.msra.mxu0 0
        %434 = vmatprep.subr.bf16.mxu0 0
        %435 = vmatpush1.bf16.msra.mxu0 0
        %436 = vmatprep.subr.bf16.mxu0 0
        %437 = vmatpush1.bf16.msra.mxu0 0
        %438 = vmatprep.mubr.bf16.mxu0 0
        %439 = vmatmul.mubr.bf16.gmra.mrb[0].mxu0 %v383
        %v440 = vpop.f32.mrb[0].mxu0
        %v441 = vadd.f32 %v367, %v440
        %v442 = vpop.f32.mrb[0].mxu0
        %v443 = vpop.f32.mrb[0].mxu0
        %v444 = vadd.f32 %v367, %v443
        %v445 = vpop.f32.mrb[0].mxu0
        %446 = vmatprep.mubr.bf16.mxu0 0
        %447 = vmatmul.mubr.bf16.gmra.mrb[0].mxu0 %v386
        %v448 = vpop.f32.mrb[0].mxu0
        %v449 = vadd.f32 %v367, %v448
        %v450 = vpop.f32.mrb[0].mxu0
        %v451 = vpop.f32.mrb[0].mxu0
        %v452 = vadd.f32 %v367, %v451
        %v453 = vpop.f32.mrb[0].mxu0
        %454 = vmatprep.mubr.bf16.mxu0 0
        %455 = vmatmul.mubr.bf16.gmra.mrb[0].mxu0 %v389
        %v456 = vpop.f32.mrb[0].mxu0
        %v457 = vadd.f32 %v367, %v456
        %v458 = vpop.f32.mrb[0].mxu0
        %v459 = vpop.f32.mrb[0].mxu0
        %v460 = vadd.f32 %v367, %v459
        %v461 = vpop.f32.mrb[0].mxu0
        %462 = vmatprep.mubr.bf16.mxu0 0
        %463 = vmatmul.mubr.bf16.gmra.mrb[0].mxu0 %v392
        %v464 = vpop.f32.mrb[0].mxu0
        %v465 = vadd.f32 %v367, %v464
        %v466 = vpop.f32.mrb[0].mxu0
        %v467 = vpop.f32.mrb[0].mxu0
        %v468 = vadd.f32 %v367, %v467
        %v469 = vpop.f32.mrb[0].mxu0
        %470 = vmatprep.mubr.bf16.mxu0 0
        %471 = vmatmul.mubr.bf16.gmra.mrb[0].mxu0 %v395
        %v472 = vpop.f32.mrb[0].mxu0
        %v473 = vadd.f32 %v367, %v472
        %v474 = vpop.f32.mrb[0].mxu0
        %v475 = vpop.f32.mrb[0].mxu0
        %v476 = vadd.f32 %v367, %v475
        %v477 = vpop.f32.mrb[0].mxu0
        %478 = vmatprep.mubr.bf16.mxu0 0
        %479 = vmatmul.mubr.bf16.gmra.mrb[0].mxu0 %v398
        %v480 = vpop.f32.mrb[0].mxu0
        %v481 = vadd.f32 %v367, %v480
        %v482 = vpop.f32.mrb[0].mxu0
        %v483 = vpop.f32.mrb[0].mxu0
        %v484 = vadd.f32 %v367, %v483
        %v485 = vpop.f32.mrb[0].mxu0
        %486 = vmatprep.mubr.bf16.mxu0 0
        %487 = vmatmul.mubr.bf16.gmra.mrb[0].mxu0 %v401
        %v488 = vpop.f32.mrb[0].mxu0
        %v489 = vadd.f32 %v367, %v488
        %v490 = vpop.f32.mrb[0].mxu0
        %v491 = vpop.f32.mrb[0].mxu0
        %v492 = vadd.f32 %v367, %v491
        %v493 = vpop.f32.mrb[0].mxu0
        %494 = vmatprep.mubr.bf16.mxu0 0
        %495 = vmatmul.mubr.bf16.gmra.mrb[0].mxu0 %v404
        %v496 = vpop.f32.mrb[0].mxu0
        %v497 = vadd.f32 %v367, %v496
        %v498 = vpop.f32.mrb[0].mxu0
        %v499 = vpop.f32.mrb[0].mxu0
        %v500 = vadd.f32 %v367, %v499
        %v501 = vpop.f32.mrb[0].mxu0
        %502 = vdwg.mxu0
        %v503 = vld [vmem:[%s268] sm:$0xf]
        %v504 = vld [vmem:[%s268 + $0x4] sm:$0xf]
        %v505 = vld [vmem:[%s268 + $0x8] sm:$0xf]
        %v506 = vld [vmem:[%s268 + $0xc] sm:$0xf]
        %v511 = vunpack.c.l.b16 %v503
        %v512 = vunpack.c.l.b16 %v504
        %v513 = vunpack.c.l.b16 %v505
        %v514 = vunpack.c.l.b16 %v506
        %v515 = vpack.c.b16 %v512, %v511
        %v516 = vpack.c.b16 %v514, %v513
        %v520 = vsel %vm381, 0, 0
        %522 = vmatprep.subr.bf16.mxu0 0
        %523 = vmatpush1.bf16.msra.mxu0 %v515
        %524 = vmatprep.subr.bf16.mxu0 0
        %525 = vmatpush1.bf16.msra.mxu0 %v516
        %526 = vmatprep.subr.bf16.mxu0 0
        %527 = vmatpush1.bf16.msra.mxu0 0
        %528 = vmatprep.subr.bf16.mxu0 0
        %529 = vmatpush1.bf16.msra.mxu0 0
        %530 = vmatprep.subr.bf16.mxu0 0
        %531 = vmatpush1.bf16.msra.mxu0 0
        %532 = vmatprep.subr.bf16.mxu0 0
        %533 = vmatpush1.bf16.msra.mxu0 0
        %534 = vmatprep.subr.bf16.mxu0 0
        %535 = vmatpush1.bf16.msra.mxu0 0
        %536 = vmatprep.subr.bf16.mxu0 0
        %537 = vmatpush1.bf16.msra.mxu0 0
        %538 = vmatprep.subr.bf16.mxu0 0
        %539 = vmatpush1.bf16.msra.mxu0 0
        %540 = vmatprep.subr.bf16.mxu0 0
        %541 = vmatpush1.bf16.msra.mxu0 0
        %542 = vmatprep.subr.bf16.mxu0 0
        %543 = vmatpush1.bf16.msra.mxu0 0
        %544 = vmatprep.subr.bf16.mxu0 0
        %545 = vmatpush1.bf16.msra.mxu0 0
        %546 = vmatprep.subr.bf16.mxu0 0
        %547 = vmatpush1.bf16.msra.mxu0 0
        %548 = vmatprep.subr.bf16.mxu0 0
        %549 = vmatpush1.bf16.msra.mxu0 0
        %550 = vmatprep.subr.bf16.mxu0 0
        %551 = vmatpush1.bf16.msra.mxu0 0
        %552 = vmatprep.subr.bf16.mxu0 0
        %553 = vmatpush1.bf16.msra.mxu0 0
        %554 = vmatprep.mubr.bf16.mxu0 0
        %555 = vmatmul.mubr.bf16.gmra.mrb[0].mxu0 %v520
        %v556 = vpop.f32.mrb[0].mxu0
        %v557 = vadd.f32 0.0, %v556
        %v558 = vpop.f32.mrb[0].mxu0
        %v559 = vpop.f32.mrb[0].mxu0
        %v560 = vadd.f32 0.0, %v559
        %v561 = vpop.f32.mrb[0].mxu0
        %562 = vdwg.mxu0
        %v563 = vadd.f32 %v441, %v557
        %v564 = vadd.f32 %v444, %v560
        %v565 = vxor.u32 %v563, 2147483648
        %v566 = vxor.u32 %v564, 2147483648
        %v567 = vmul.f32 %v565, 1.442695
        %v568 = vpow.pop %v567
        %v569 = vmul.f32 %v566, 1.442695
        %v570 = vpow.pop %v569
        %v571 = vadd.f32 %v568, 1.0
        %v572 = vadd.f32 %v570, 1.0
        %v573 = vrcp.pop %v571
        %v574 = vmul.f32 1.0, %v573
        %v575 = vrcp.pop %v572
        %v576 = vmul.f32 1.0, %v575
        %v577 = vtanh.pop %v563
        %v578 = vtanh.pop %v564
        %v579 = vmul.f32 %v574, 0.0
        %v580 = vmul.f32 %v576, 0.0
        %583 = vrot.lane.b32.xlu0 %v577, 32
        %v584 = vpop.permute.xlu0 %583
        %585 = vrot.lane.b32.xlu0 %v578, 32
        %v586 = vpop.permute.xlu0 %585
        %v589 = vmul.f32 %v574, %v584
        %v590 = vmul.f32 %v576, %v586
        %593 = vrot.lane.b32.xlu0 %v589, 32
        %v594 = vpop.permute.xlu0 %593
        %595 = vrot.lane.b32.xlu0 %v590, 32
        %v596 = vpop.permute.xlu0 %595
        %v599 = vadd.f32 %v579, %v594
        %v600 = vadd.f32 %v580, %v596
        %v601 = vtanh.pop %v599
        %v602 = vtanh.pop %v600
        %605 = vrot.lane.b32.xlu0 %v601, 32
        %v606 = vpop.permute.xlu0 %605
        %607 = vrot.lane.b32.xlu0 %v602, 32
        %v608 = vpop.permute.xlu0 %607
        %v611 = vmul.f32 %v574, %v606
        %v612 = vmul.f32 %v576, %v608
        %v613 = vpack.c.bf16 %v612, %v611
        %615 = vrot.lane.b32.xlu0 %v613, 64
        %v616 = vpop.permute.xlu0 %615
        %618 = vst.msk [vmem:[#allocation2] sm:$0xff] %vm381, %v616
        %v620 = vsel %vm381, %v616, 0
        %622 = vmatprep.subr.bf16.mxu0 0
        %623 = vmatpush1.bf16.msra.mxu0 %v515
        %624 = vmatprep.subr.bf16.mxu0 0
        %625 = vmatpush1.bf16.msra.mxu0 %v516
        %626 = vmatprep.subr.bf16.mxu0 0
        %627 = vmatpush1.bf16.msra.mxu0 0
        %628 = vmatprep.subr.bf16.mxu0 0
        %629 = vmatpush1.bf16.msra.mxu0 0
        %630 = vmatprep.subr.bf16.mxu0 0
        %631 = vmatpush1.bf16.msra.mxu0 0
        %632 = vmatprep.subr.bf16.mxu0 0
        %633 = vmatpush1.bf16.msra.mxu0 0
        %634 = vmatprep.subr.bf16.mxu0 0
        %635 = vmatpush1.bf16.msra.mxu0 0
        %636 = vmatprep.subr.bf16.mxu0 0
        %637 = vmatpush1.bf16.msra.mxu0 0
        %638 = vmatprep.subr.bf16.mxu0 0
        %639 = vmatpush1.bf16.msra.mxu0 0
        %640 = vmatprep.subr.bf16.mxu0 0
        %641 = vmatpush1.bf16.msra.mxu0 0
        %642 = vmatprep.subr.bf16.mxu0 0
        %643 = vmatpush1.bf16.msra.mxu0 0
        %644 = vmatprep.subr.bf16.mxu0 0
        %645 = vmatpush1.bf16.msra.mxu0 0
        %646 = vmatprep.subr.bf16.mxu0 0
        %647 = vmatpush1.bf16.msra.mxu0 0
        %648 = vmatprep.subr.bf16.mxu0 0
        %649 = vmatpush1.bf16.msra.mxu0 0
        %650 = vmatprep.subr.bf16.mxu0 0
        %651 = vmatpush1.bf16.msra.mxu0 0
        %652 = vmatprep.subr.bf16.mxu0 0
        %653 = vmatpush1.bf16.msra.mxu0 0
        %654 = vmatprep.mubr.bf16.mxu0 0
        %655 = vmatmul.mubr.bf16.gmra.mrb[0].mxu0 %v620
        %v656 = vpop.f32.mrb[0].mxu0
        %v657 = vadd.f32 0.0, %v656
        %v658 = vpop.f32.mrb[0].mxu0
        %v659 = vpop.f32.mrb[0].mxu0
        %v660 = vadd.f32 0.0, %v659
        %v661 = vpop.f32.mrb[0].mxu0
        %662 = vdwg.mxu0
        %v663 = vadd.f32 %v449, %v657
        %v664 = vadd.f32 %v452, %v660
        %v665 = vxor.u32 %v663, 2147483648
        %v666 = vxor.u32 %v664, 2147483648
        %v667 = vmul.f32 %v665, 1.442695
        %v668 = vpow.pop %v667
        %v669 = vmul.f32 %v666, 1.442695
        %v670 = vpow.pop %v669
        %v671 = vadd.f32 %v668, 1.0
        %v672 = vadd.f32 %v670, 1.0
        %v673 = vrcp.pop %v671
        %v674 = vmul.f32 1.0, %v673
        %v675 = vrcp.pop %v672
        %v676 = vmul.f32 1.0, %v675
        %v677 = vtanh.pop %v663
        %v678 = vtanh.pop %v664
        %v679 = vmul.f32 %v674, %v599
        %v680 = vmul.f32 %v676, %v600
        %683 = vrot.lane.b32.xlu0 %v677, 32
        %v684 = vpop.permute.xlu0 %683
        %685 = vrot.lane.b32.xlu0 %v678, 32
        %v686 = vpop.permute.xlu0 %685
        %v689 = vmul.f32 %v674, %v684
        %v690 = vmul.f32 %v676, %v686
        %693 = vrot.lane.b32.xlu0 %v689, 32
        %v694 = vpop.permute.xlu0 %693
        %695 = vrot.lane.b32.xlu0 %v690, 32
        %v696 = vpop.permute.xlu0 %695
        %v699 = vadd.f32 %v679, %v694
        %v700 = vadd.f32 %v680, %v696
        %v701 = vtanh.pop %v699
        %v702 = vtanh.pop %v700
        %705 = vrot.lane.b32.xlu0 %v701, 32
        %v706 = vpop.permute.xlu0 %705
        %707 = vrot.lane.b32.xlu0 %v702, 32
        %v708 = vpop.permute.xlu0 %707
        %v711 = vmul.f32 %v674, %v706
        %v712 = vmul.f32 %v676, %v708
        %v713 = vpack.c.bf16 %v712, %v711
        %715 = vrot.lane.b32.xlu0 %v713, 64
        %v716 = vpop.permute.xlu0 %715
        %718 = vst.msk [vmem:[#allocation2 + $0x8] sm:$0xff] %vm381, %v716
        %v720 = vsel %vm381, %v716, 0
        %722 = vmatprep.subr.bf16.mxu0 0
        %723 = vmatpush1.bf16.msra.mxu0 %v515
        %724 = vmatprep.subr.bf16.mxu0 0
        %725 = vmatpush1.bf16.msra.mxu0 %v516
        %726 = vmatprep.subr.bf16.mxu0 0
        %727 = vmatpush1.bf16.msra.mxu0 0
        %728 = vmatprep.subr.bf16.mxu0 0
        %729 = vmatpush1.bf16.msra.mxu0 0
        %730 = vmatprep.subr.bf16.mxu0 0
        %731 = vmatpush1.bf16.msra.mxu0 0
        %732 = vmatprep.subr.bf16.mxu0 0
        %733 = vmatpush1.bf16.msra.mxu0 0
        %734 = vmatprep.subr.bf16.mxu0 0
        %735 = vmatpush1.bf16.msra.mxu0 0
        %736 = vmatprep.subr.bf16.mxu0 0
        %737 = vmatpush1.bf16.msra.mxu0 0
        %738 = vmatprep.subr.bf16.mxu0 0
        %739 = vmatpush1.bf16.msra.mxu0 0
        %740 = vmatprep.subr.bf16.mxu0 0
        %741 = vmatpush1.bf16.msra.mxu0 0
        %742 = vmatprep.subr.bf16.mxu0 0
        %743 = vmatpush1.bf16.msra.mxu0 0
        %744 = vmatprep.subr.bf16.mxu0 0
        %745 = vmatpush1.bf16.msra.mxu0 0
        %746 = vmatprep.subr.bf16.mxu0 0
        %747 = vmatpush1.bf16.msra.mxu0 0
        %748 = vmatprep.subr.bf16.mxu0 0
        %749 = vmatpush1.bf16.msra.mxu0 0
        %750 = vmatprep.subr.bf16.mxu0 0
        %751 = vmatpush1.bf16.msra.mxu0 0
        %752 = vmatprep.subr.bf16.mxu0 0
        %753 = vmatpush1.bf16.msra.mxu0 0
        %754 = vmatprep.mubr.bf16.mxu0 0
        %755 = vmatmul.mubr.bf16.gmra.mrb[0].mxu0 %v720
        %v756 = vpop.f32.mrb[0].mxu0
        %v757 = vadd.f32 0.0, %v756
        %v758 = vpop.f32.mrb[0].mxu0
        %v759 = vpop.f32.mrb[0].mxu0
        %v760 = vadd.f32 0.0, %v759
        %v761 = vpop.f32.mrb[0].mxu0
        %762 = vdwg.mxu0
        %v763 = vadd.f32 %v457, %v757
        %v764 = vadd.f32 %v460, %v760
        %v765 = vxor.u32 %v763, 2147483648
        %v766 = vxor.u32 %v764, 2147483648
        %v767 = vmul.f32 %v765, 1.442695
        %v768 = vpow.pop %v767
        %v769 = vmul.f32 %v766, 1.442695
        %v770 = vpow.pop %v769
        %v771 = vadd.f32 %v768, 1.0
        %v772 = vadd.f32 %v770, 1.0
        %v773 = vrcp.pop %v771
        %v774 = vmul.f32 1.0, %v773
        %v775 = vrcp.pop %v772
        %v776 = vmul.f32 1.0, %v775
        %v777 = vtanh.pop %v763
        %v778 = vtanh.pop %v764
        %v779 = vmul.f32 %v774, %v699
        %v780 = vmul.f32 %v776, %v700
        %783 = vrot.lane.b32.xlu0 %v777, 32
        %v784 = vpop.permute.xlu0 %783
        %785 = vrot.lane.b32.xlu0 %v778, 32
        %v786 = vpop.permute.xlu0 %785
        %v789 = vmul.f32 %v774, %v784
        %v790 = vmul.f32 %v776, %v786
        %793 = vrot.lane.b32.xlu0 %v789, 32
        %v794 = vpop.permute.xlu0 %793
        %795 = vrot.lane.b32.xlu0 %v790, 32
        %v796 = vpop.permute.xlu0 %795
        %v799 = vadd.f32 %v779, %v794
        %v800 = vadd.f32 %v780, %v796
        %v801 = vtanh.pop %v799
        %v802 = vtanh.pop %v800
        %805 = vrot.lane.b32.xlu0 %v801, 32
        %v806 = vpop.permute.xlu0 %805
        %807 = vrot.lane.b32.xlu0 %v802, 32
        %v808 = vpop.permute.xlu0 %807
        %v811 = vmul.f32 %v774, %v806
        %v812 = vmul.f32 %v776, %v808
        %v813 = vpack.c.bf16 %v812, %v811
        %815 = vrot.lane.b32.xlu0 %v813, 64
        %v816 = vpop.permute.xlu0 %815
        %818 = vst.msk [vmem:[#allocation2 + $0x10] sm:$0xff] %vm381, %v816
        %v820 = vsel %vm381, %v816, 0
        %822 = vmatprep.subr.bf16.mxu0 0
        %823 = vmatpush1.bf16.msra.mxu0 %v515
        %824 = vmatprep.subr.bf16.mxu0 0
        %825 = vmatpush1.bf16.msra.mxu0 %v516
        %826 = vmatprep.subr.bf16.mxu0 0
        %827 = vmatpush1.bf16.msra.mxu0 0
        %828 = vmatprep.subr.bf16.mxu0 0
        %829 = vmatpush1.bf16.msra.mxu0 0
        %830 = vmatprep.subr.bf16.mxu0 0
        %831 = vmatpush1.bf16.msra.mxu0 0
        %832 = vmatprep.subr.bf16.mxu0 0
        %833 = vmatpush1.bf16.msra.mxu0 0
        %834 = vmatprep.subr.bf16.mxu0 0
        %835 = vmatpush1.bf16.msra.mxu0 0
        %836 = vmatprep.subr.bf16.mxu0 0
        %837 = vmatpush1.bf16.msra.mxu0 0
        %838 = vmatprep.subr.bf16.mxu0 0
        %839 = vmatpush1.bf16.msra.mxu0 0
        %840 = vmatprep.subr.bf16.mxu0 0
        %841 = vmatpush1.bf16.msra.mxu0 0
        %842 = vmatprep.subr.bf16.mxu0 0
        %843 = vmatpush1.bf16.msra.mxu0 0
        %844 = vmatprep.subr.bf16.mxu0 0
        %845 = vmatpush1.bf16.msra.mxu0 0
        %846 = vmatprep.subr.bf16.mxu0 0
        %847 = vmatpush1.bf16.msra.mxu0 0
        %848 = vmatprep.subr.bf16.mxu0 0
        %849 = vmatpush1.bf16.msra.mxu0 0
        %850 = vmatprep.subr.bf16.mxu0 0
        %851 = vmatpush1.bf16.msra.mxu0 0
        %852 = vmatprep.subr.bf16.mxu0 0
        %853 = vmatpush1.bf16.msra.mxu0 0
        %854 = vmatprep.mubr.bf16.mxu0 0
        %855 = vmatmul.mubr.bf16.gmra.mrb[0].mxu0 %v820
        %v856 = vpop.f32.mrb[0].mxu0
        %v857 = vadd.f32 0.0, %v856
        %v858 = vpop.f32.mrb[0].mxu0
        %v859 = vpop.f32.mrb[0].mxu0
        %v860 = vadd.f32 0.0, %v859
        %v861 = vpop.f32.mrb[0].mxu0
        %862 = vdwg.mxu0
        %v863 = vadd.f32 %v465, %v857
        %v864 = vadd.f32 %v468, %v860
        %v865 = vxor.u32 %v863, 2147483648
        %v866 = vxor.u32 %v864, 2147483648
        %v867 = vmul.f32 %v865, 1.442695
        %v868 = vpow.pop %v867
        %v869 = vmul.f32 %v866, 1.442695
        %v870 = vpow.pop %v869
        %v871 = vadd.f32 %v868, 1.0
        %v872 = vadd.f32 %v870, 1.0
        %v873 = vrcp.pop %v871
        %v874 = vmul.f32 1.0, %v873
        %v875 = vrcp.pop %v872
        %v876 = vmul.f32 1.0, %v875
        %v877 = vtanh.pop %v863
        %v878 = vtanh.pop %v864
        %v879 = vmul.f32 %v874, %v799
        %v880 = vmul.f32 %v876, %v800
        %883 = vrot.lane.b32.xlu0 %v877, 32
        %v884 = vpop.permute.xlu0 %883
        %885 = vrot.lane.b32.xlu0 %v878, 32
        %v886 = vpop.permute.xlu0 %885
        %v889 = vmul.f32 %v874, %v884
        %v890 = vmul.f32 %v876, %v886
        %893 = vrot.lane.b32.xlu0 %v889, 32
        %v894 = vpop.permute.xlu0 %893
        %895 = vrot.lane.b32.xlu0 %v890, 32
        %v896 = vpop.permute.xlu0 %895
        %v899 = vadd.f32 %v879, %v894
        %v900 = vadd.f32 %v880, %v896
        %v901 = vtanh.pop %v899
        %v902 = vtanh.pop %v900
        %905 = vrot.lane.b32.xlu0 %v901, 32
        %v906 = vpop.permute.xlu0 %905
        %907 = vrot.lane.b32.xlu0 %v902, 32
        %v908 = vpop.permute.xlu0 %907
        %v911 = vmul.f32 %v874, %v906
        %v912 = vmul.f32 %v876, %v908
        %v913 = vpack.c.bf16 %v912, %v911
        %915 = vrot.lane.b32.xlu0 %v913, 64
        %v916 = vpop.permute.xlu0 %915
        %918 = vst.msk [vmem:[#allocation2 + $0x18] sm:$0xff] %vm381, %v916
        %v920 = vsel %vm381, %v916, 0
        %922 = vmatprep.subr.bf16.mxu0 0
        %923 = vmatpush1.bf16.msra.mxu0 %v515
        %924 = vmatprep.subr.bf16.mxu0 0
        %925 = vmatpush1.bf16.msra.mxu0 %v516
        %926 = vmatprep.subr.bf16.mxu0 0
        %927 = vmatpush1.bf16.msra.mxu0 0
        %928 = vmatprep.subr.bf16.mxu0 0
        %929 = vmatpush1.bf16.msra.mxu0 0
        %930 = vmatprep.subr.bf16.mxu0 0
        %931 = vmatpush1.bf16.msra.mxu0 0
        %932 = vmatprep.subr.bf16.mxu0 0
        %933 = vmatpush1.bf16.msra.mxu0 0
        %934 = vmatprep.subr.bf16.mxu0 0
        %935 = vmatpush1.bf16.msra.mxu0 0
        %936 = vmatprep.subr.bf16.mxu0 0
        %937 = vmatpush1.bf16.msra.mxu0 0
        %938 = vmatprep.subr.bf16.mxu0 0
        %939 = vmatpush1.bf16.msra.mxu0 0
        %940 = vmatprep.subr.bf16.mxu0 0
        %941 = vmatpush1.bf16.msra.mxu0 0
        %942 = vmatprep.subr.bf16.mxu0 0
        %943 = vmatpush1.bf16.msra.mxu0 0
        %944 = vmatprep.subr.bf16.mxu0 0
        %945 = vmatpush1.bf16.msra.mxu0 0
        %946 = vmatprep.subr.bf16.mxu0 0
        %947 = vmatpush1.bf16.msra.mxu0 0
        %948 = vmatprep.subr.bf16.mxu0 0
        %949 = vmatpush1.bf16.msra.mxu0 0
        %950 = vmatprep.subr.bf16.mxu0 0
        %951 = vmatpush1.bf16.msra.mxu0 0
        %952 = vmatprep.subr.bf16.mxu0 0
        %953 = vmatpush1.bf16.msra.mxu0 0
        %954 = vmatprep.mubr.bf16.mxu0 0
        %955 = vmatmul.mubr.bf16.gmra.mrb[0].mxu0 %v920
        %v956 = vpop.f32.mrb[0].mxu0
        %v957 = vadd.f32 0.0, %v956
        %v958 = vpop.f32.mrb[0].mxu0
        %v959 = vpop.f32.mrb[0].mxu0
        %v960 = vadd.f32 0.0, %v959
        %v961 = vpop.f32.mrb[0].mxu0
        %962 = vdwg.mxu0
        %v963 = vadd.f32 %v473, %v957
        %v964 = vadd.f32 %v476, %v960
        %v965 = vxor.u32 %v963, 2147483648
        %v966 = vxor.u32 %v964, 2147483648
        %v967 = vmul.f32 %v965, 1.442695
        %v968 = vpow.pop %v967
        %v969 = vmul.f32 %v966, 1.442695
        %v970 = vpow.pop %v969
        %v971 = vadd.f32 %v968, 1.0
        %v972 = vadd.f32 %v970, 1.0
        %v973 = vrcp.pop %v971
        %v974 = vmul.f32 1.0, %v973
        %v975 = vrcp.pop %v972
        %v976 = vmul.f32 1.0, %v975
        %v977 = vtanh.pop %v963
        %v978 = vtanh.pop %v964
        %v979 = vmul.f32 %v974, %v899
        %v980 = vmul.f32 %v976, %v900
        %983 = vrot.lane.b32.xlu0 %v977, 32
        %v984 = vpop.permute.xlu0 %983
        %985 = vrot.lane.b32.xlu0 %v978, 32
        %v986 = vpop.permute.xlu0 %985
        %v989 = vmul.f32 %v974, %v984
        %v990 = vmul.f32 %v976, %v986
        %993 = vrot.lane.b32.xlu0 %v989, 32
        %v994 = vpop.permute.xlu0 %993
        %995 = vrot.lane.b32.xlu0 %v990, 32
        %v996 = vpop.permute.xlu0 %995
        %v999 = vadd.f32 %v979, %v994
        %v1000 = vadd.f32 %v980, %v996
        %v1001 = vtanh.pop %v999
        %v1002 = vtanh.pop %v1000
        %1005 = vrot.lane.b32.xlu0 %v1001, 32
        %v1006 = vpop.permute.xlu0 %1005
        %1007 = vrot.lane.b32.xlu0 %v1002, 32
        %v1008 = vpop.permute.xlu0 %1007
        %v1011 = vmul.f32 %v974, %v1006
        %v1012 = vmul.f32 %v976, %v1008
        %v1013 = vpack.c.bf16 %v1012, %v1011
        %1015 = vrot.lane.b32.xlu0 %v1013, 64
        %v1016 = vpop.permute.xlu0 %1015
        %1018 = vst.msk [vmem:[#allocation2 + $0x20] sm:$0xff] %vm381, %v1016
        %v1020 = vsel %vm381, %v1016, 0
        %1022 = vmatprep.subr.bf16.mxu0 0
        %1023 = vmatpush1.bf16.msra.mxu0 %v515
        %1024 = vmatprep.subr.bf16.mxu0 0
        %1025 = vmatpush1.bf16.msra.mxu0 %v516
        %1026 = vmatprep.subr.bf16.mxu0 0
        %1027 = vmatpush1.bf16.msra.mxu0 0
        %1028 = vmatprep.subr.bf16.mxu0 0
        %1029 = vmatpush1.bf16.msra.mxu0 0
        %1030 = vmatprep.subr.bf16.mxu0 0
        %1031 = vmatpush1.bf16.msra.mxu0 0
        %1032 = vmatprep.subr.bf16.mxu0 0
        %1033 = vmatpush1.bf16.msra.mxu0 0
        %1034 = vmatprep.subr.bf16.mxu0 0
        %1035 = vmatpush1.bf16.msra.mxu0 0
        %1036 = vmatprep.subr.bf16.mxu0 0
        %1037 = vmatpush1.bf16.msra.mxu0 0
        %1038 = vmatprep.subr.bf16.mxu0 0
        %1039 = vmatpush1.bf16.msra.mxu0 0
        %1040 = vmatprep.subr.bf16.mxu0 0
        %1041 = vmatpush1.bf16.msra.mxu0 0
        %1042 = vmatprep.subr.bf16.mxu0 0
        %1043 = vmatpush1.bf16.msra.mxu0 0
        %1044 = vmatprep.subr.bf16.mxu0 0
        %1045 = vmatpush1.bf16.msra.mxu0 0
        %1046 = vmatprep.subr.bf16.mxu0 0
        %1047 = vmatpush1.bf16.msra.mxu0 0
        %1048 = vmatprep.subr.bf16.mxu0 0
        %1049 = vmatpush1.bf16.msra.mxu0 0
        %1050 = vmatprep.subr.bf16.mxu0 0
        %1051 = vmatpush1.bf16.msra.mxu0 0
        %1052 = vmatprep.subr.bf16.mxu0 0
        %1053 = vmatpush1.bf16.msra.mxu0 0
        %1054 = vmatprep.mubr.bf16.mxu0 0
        %1055 = vmatmul.mubr.bf16.gmra.mrb[0].mxu0 %v1020
        %v1056 = vpop.f32.mrb[0].mxu0
        %v1057 = vadd.f32 0.0, %v1056
        %v1058 = vpop.f32.mrb[0].mxu0
        %v1059 = vpop.f32.mrb[0].mxu0
        %v1060 = vadd.f32 0.0, %v1059
        %v1061 = vpop.f32.mrb[0].mxu0
        %1062 = vdwg.mxu0
        %v1063 = vadd.f32 %v481, %v1057
        %v1064 = vadd.f32 %v484, %v1060
        %v1065 = vxor.u32 %v1063, 2147483648
        %v1066 = vxor.u32 %v1064, 2147483648
        %v1067 = vmul.f32 %v1065, 1.442695
        %v1068 = vpow.pop %v1067
        %v1069 = vmul.f32 %v1066, 1.442695
        %v1070 = vpow.pop %v1069
        %v1071 = vadd.f32 %v1068, 1.0
        %v1072 = vadd.f32 %v1070, 1.0
        %v1073 = vrcp.pop %v1071
        %v1074 = vmul.f32 1.0, %v1073
        %v1075 = vrcp.pop %v1072
        %v1076 = vmul.f32 1.0, %v1075
        %v1077 = vtanh.pop %v1063
        %v1078 = vtanh.pop %v1064
        %v1079 = vmul.f32 %v1074, %v999
        %v1080 = vmul.f32 %v1076, %v1000
        %1083 = vrot.lane.b32.xlu0 %v1077, 32
        %v1084 = vpop.permute.xlu0 %1083
        %1085 = vrot.lane.b32.xlu0 %v1078, 32
        %v1086 = vpop.permute.xlu0 %1085
        %v1089 = vmul.f32 %v1074, %v1084
        %v1090 = vmul.f32 %v1076, %v1086
        %1093 = vrot.lane.b32.xlu0 %v1089, 32
        %v1094 = vpop.permute.xlu0 %1093
        %1095 = vrot.lane.b32.xlu0 %v1090, 32
        %v1096 = vpop.permute.xlu0 %1095
        %v1099 = vadd.f32 %v1079, %v1094
        %v1100 = vadd.f32 %v1080, %v1096
        %v1101 = vtanh.pop %v1099
        %v1102 = vtanh.pop %v1100
        %1105 = vrot.lane.b32.xlu0 %v1101, 32
        %v1106 = vpop.permute.xlu0 %1105
        %1107 = vrot.lane.b32.xlu0 %v1102, 32
        %v1108 = vpop.permute.xlu0 %1107
        %v1111 = vmul.f32 %v1074, %v1106
        %v1112 = vmul.f32 %v1076, %v1108
        %v1113 = vpack.c.bf16 %v1112, %v1111
        %1115 = vrot.lane.b32.xlu0 %v1113, 64
        %v1116 = vpop.permute.xlu0 %1115
        %1118 = vst.msk [vmem:[#allocation2 + $0x28] sm:$0xff] %vm381, %v1116
        %v1120 = vsel %vm381, %v1116, 0
        %1122 = vmatprep.subr.bf16.mxu0 0
        %1123 = vmatpush1.bf16.msra.mxu0 %v515
        %1124 = vmatprep.subr.bf16.mxu0 0
        %1125 = vmatpush1.bf16.msra.mxu0 %v516
        %1126 = vmatprep.subr.bf16.mxu0 0
        %1127 = vmatpush1.bf16.msra.mxu0 0
        %1128 = vmatprep.subr.bf16.mxu0 0
        %1129 = vmatpush1.bf16.msra.mxu0 0
        %1130 = vmatprep.subr.bf16.mxu0 0
        %1131 = vmatpush1.bf16.msra.mxu0 0
        %1132 = vmatprep.subr.bf16.mxu0 0
        %1133 = vmatpush1.bf16.msra.mxu0 0
        %1134 = vmatprep.subr.bf16.mxu0 0
        %1135 = vmatpush1.bf16.msra.mxu0 0
        %1136 = vmatprep.subr.bf16.mxu0 0
        %1137 = vmatpush1.bf16.msra.mxu0 0
        %1138 = vmatprep.subr.bf16.mxu0 0
        %1139 = vmatpush1.bf16.msra.mxu0 0
        %1140 = vmatprep.subr.bf16.mxu0 0
        %1141 = vmatpush1.bf16.msra.mxu0 0
        %1142 = vmatprep.subr.bf16.mxu0 0
        %1143 = vmatpush1.bf16.msra.mxu0 0
        %1144 = vmatprep.subr.bf16.mxu0 0
        %1145 = vmatpush1.bf16.msra.mxu0 0
        %1146 = vmatprep.subr.bf16.mxu0 0
        %1147 = vmatpush1.bf16.msra.mxu0 0
        %1148 = vmatprep.subr.bf16.mxu0 0
        %1149 = vmatpush1.bf16.msra.mxu0 0
        %1150 = vmatprep.subr.bf16.mxu0 0
        %1151 = vmatpush1.bf16.msra.mxu0 0
        %1152 = vmatprep.subr.bf16.mxu0 0
        %1153 = vmatpush1.bf16.msra.mxu0 0
        %1154 = vmatprep.mubr.bf16.mxu0 0
        %1155 = vmatmul.mubr.bf16.gmra.mrb[0].mxu0 %v1120
        %v1156 = vpop.f32.mrb[0].mxu0
        %v1157 = vadd.f32 0.0, %v1156
        %v1158 = vpop.f32.mrb[0].mxu0
        %v1159 = vpop.f32.mrb[0].mxu0
        %v1160 = vadd.f32 0.0, %v1159
        %v1161 = vpop.f32.mrb[0].mxu0
        %1162 = vdwg.mxu0
        %v1163 = vadd.f32 %v489, %v1157
        %v1164 = vadd.f32 %v492, %v1160
        %v1165 = vxor.u32 %v1163, 2147483648
        %v1166 = vxor.u32 %v1164, 2147483648
        %v1167 = vmul.f32 %v1165, 1.442695
        %v1168 = vpow.pop %v1167
        %v1169 = vmul.f32 %v1166, 1.442695
        %v1170 = vpow.pop %v1169
        %v1171 = vadd.f32 %v1168, 1.0
        %v1172 = vadd.f32 %v1170, 1.0
        %v1173 = vrcp.pop %v1171
        %v1174 = vmul.f32 1.0, %v1173
        %v1175 = vrcp.pop %v1172
        %v1176 = vmul.f32 1.0, %v1175
        %v1177 = vtanh.pop %v1163
        %v1178 = vtanh.pop %v1164
        %v1179 = vmul.f32 %v1174, %v1099
        %v1180 = vmul.f32 %v1176, %v1100
        %1183 = vrot.lane.b32.xlu0 %v1177, 32
        %v1184 = vpop.permute.xlu0 %1183
        %1185 = vrot.lane.b32.xlu0 %v1178, 32
        %v1186 = vpop.permute.xlu0 %1185
        %v1189 = vmul.f32 %v1174, %v1184
        %v1190 = vmul.f32 %v1176, %v1186
        %1193 = vrot.lane.b32.xlu0 %v1189, 32
        %v1194 = vpop.permute.xlu0 %1193
        %1195 = vrot.lane.b32.xlu0 %v1190, 32
        %v1196 = vpop.permute.xlu0 %1195
        %v1199 = vadd.f32 %v1179, %v1194
        %v1200 = vadd.f32 %v1180, %v1196
        %v1201 = vtanh.pop %v1199
        %v1202 = vtanh.pop %v1200
        %1205 = vrot.lane.b32.xlu0 %v1201, 32
        %v1206 = vpop.permute.xlu0 %1205
        %1207 = vrot.lane.b32.xlu0 %v1202, 32
        %v1208 = vpop.permute.xlu0 %1207
        %v1211 = vmul.f32 %v1174, %v1206
        %v1212 = vmul.f32 %v1176, %v1208
        %v1213 = vpack.c.bf16 %v1212, %v1211
        %1215 = vrot.lane.b32.xlu0 %v1213, 64
        %v1216 = vpop.permute.xlu0 %1215
        %1218 = vst.msk [vmem:[#allocation2 + $0x30] sm:$0xff] %vm381, %v1216
        %v1220 = vsel %vm381, %v1216, 0
        %1222 = vmatprep.subr.bf16.mxu0 0
        %1223 = vmatpush1.bf16.msra.mxu0 %v515
        %1224 = vmatprep.subr.bf16.mxu0 0
        %1225 = vmatpush1.bf16.msra.mxu0 %v516
        %1226 = vmatprep.subr.bf16.mxu0 0
        %1227 = vmatpush1.bf16.msra.mxu0 0
        %1228 = vmatprep.subr.bf16.mxu0 0
        %1229 = vmatpush1.bf16.msra.mxu0 0
        %1230 = vmatprep.subr.bf16.mxu0 0
        %1231 = vmatpush1.bf16.msra.mxu0 0
        %1232 = vmatprep.subr.bf16.mxu0 0
        %1233 = vmatpush1.bf16.msra.mxu0 0
        %1234 = vmatprep.subr.bf16.mxu0 0
        %1235 = vmatpush1.bf16.msra.mxu0 0
        %1236 = vmatprep.subr.bf16.mxu0 0
        %1237 = vmatpush1.bf16.msra.mxu0 0
        %1238 = vmatprep.subr.bf16.mxu0 0
        %1239 = vmatpush1.bf16.msra.mxu0 0
        %1240 = vmatprep.subr.bf16.mxu0 0
        %1241 = vmatpush1.bf16.msra.mxu0 0
        %1242 = vmatprep.subr.bf16.mxu0 0
        %1243 = vmatpush1.bf16.msra.mxu0 0
        %1244 = vmatprep.subr.bf16.mxu0 0
        %1245 = vmatpush1.bf16.msra.mxu0 0
        %1246 = vmatprep.subr.bf16.mxu0 0
        %1247 = vmatpush1.bf16.msra.mxu0 0
        %1248 = vmatprep.subr.bf16.mxu0 0
        %1249 = vmatpush1.bf16.msra.mxu0 0
        %1250 = vmatprep.subr.bf16.mxu0 0
        %1251 = vmatpush1.bf16.msra.mxu0 0
        %1252 = vmatprep.subr.bf16.mxu0 0
        %1253 = vmatpush1.bf16.msra.mxu0 0
        %1254 = vmatprep.mubr.bf16.mxu0 0
        %1255 = vmatmul.mubr.bf16.gmra.mrb[0].mxu0 %v1220
        %v1256 = vpop.f32.mrb[0].mxu0
        %v1257 = vadd.f32 0.0, %v1256
        %v1258 = vpop.f32.mrb[0].mxu0
        %v1259 = vpop.f32.mrb[0].mxu0
        %v1260 = vadd.f32 0.0, %v1259
        %v1261 = vpop.f32.mrb[0].mxu0
        %1262 = vdwg.mxu0
        %v1263 = vadd.f32 %v497, %v1257
        %v1264 = vadd.f32 %v500, %v1260
        %v1265 = vxor.u32 %v1263, 2147483648
        %v1266 = vxor.u32 %v1264, 2147483648
        %v1267 = vmul.f32 %v1265, 1.442695
        %v1268 = vpow.pop %v1267
        %v1269 = vmul.f32 %v1266, 1.442695
        %v1270 = vpow.pop %v1269
        %v1271 = vadd.f32 %v1268, 1.0
        %v1272 = vadd.f32 %v1270, 1.0
        %v1273 = vrcp.pop %v1271
        %v1274 = vmul.f32 1.0, %v1273
        %v1275 = vrcp.pop %v1272
        %v1276 = vmul.f32 1.0, %v1275
        %v1277 = vtanh.pop %v1263
        %v1278 = vtanh.pop %v1264
        %v1279 = vmul.f32 %v1274, %v1199
        %v1280 = vmul.f32 %v1276, %v1200
        %1283 = vrot.lane.b32.xlu0 %v1277, 32
        %v1284 = vpop.permute.xlu0 %1283
        %1285 = vrot.lane.b32.xlu0 %v1278, 32
        %v1286 = vpop.permute.xlu0 %1285
        %v1289 = vmul.f32 %v1274, %v1284
        %v1290 = vmul.f32 %v1276, %v1286
        %1293 = vrot.lane.b32.xlu0 %v1289, 32
        %v1294 = vpop.permute.xlu0 %1293
        %1295 = vrot.lane.b32.xlu0 %v1290, 32
        %v1296 = vpop.permute.xlu0 %1295
        %v1299 = vadd.f32 %v1279, %v1294
        %v1300 = vadd.f32 %v1280, %v1296
        %v1301 = vtanh.pop %v1299
        %v1302 = vtanh.pop %v1300
        %1305 = vrot.lane.b32.xlu0 %v1301, 32
        %v1306 = vpop.permute.xlu0 %1305
        %1307 = vrot.lane.b32.xlu0 %v1302, 32
        %v1308 = vpop.permute.xlu0 %1307
        %v1311 = vmul.f32 %v1274, %v1306
        %v1312 = vmul.f32 %v1276, %v1308
        %v1313 = vpack.c.bf16 %v1312, %v1311
        %1315 = vrot.lane.b32.xlu0 %v1313, 64
        %v1316 = vpop.permute.xlu0 %1315
        %1318 = vst.msk [vmem:[#allocation2 + $0x38] sm:$0xff] %vm381, %v1316
        %p1319 = scmp.eq.s32.totalorder %s18, 1
        // Predicated region
        $region49: #{tpu_custom_call.1} parent=43 // pred_check
          %p1320 = pneg %p1319
        $region50: #{tpu_custom_call.1} parent=43 // pred_check_branch
          %1322 = sbr.rel (%p1320) target = $region52
        $region51: #{tpu_custom_call.1} parent=43 // pred_region
          %v1323 = vld [vmem:[#allocation2] sm:$0xff]
          %v1324 = vld [vmem:[#allocation2 + $0x8] sm:$0xff]
          %v1325 = vld [vmem:[#allocation2 + $0x10] sm:$0xff]
          %v1326 = vld [vmem:[#allocation2 + $0x18] sm:$0xff]
          %v1327 = vld [vmem:[#allocation2 + $0x20] sm:$0xff]
          %v1328 = vld [vmem:[#allocation2 + $0x28] sm:$0xff]
          %v1329 = vld [vmem:[#allocation2 + $0x30] sm:$0xff]
          %v1330 = vld [vmem:[#allocation2 + $0x38] sm:$0xff]
          %v1331 = vld [vmem:[%s4] sm:$0xf]
          %v1332 = vld [vmem:[%s4 + $0x4] sm:$0xf]
          %v1333 = vld [vmem:[%s4 + $0x8] sm:$0xf]
          %v1334 = vld [vmem:[%s4 + $0xc] sm:$0xf]
          %v1335 = vld [vmem:[%s5] sm:$0x1]
          %v1337 = vlaneseq
          %v1338 = vshrl.u32 %v1337, 7
          %v1339 = vsub.s32 0, %v1338
          %v1340 = vrot.slane %v1335, %v1339
          %v1346 = vunpack.c.l.b16 %v1331
          %v1347 = vunpack.c.l.b16 %v1332
          %v1348 = vunpack.c.l.b16 %v1333
          %v1349 = vunpack.c.l.b16 %v1334
          %v1350 = vpack.c.b16 %v1347, %v1346
          %v1351 = vpack.c.b16 %v1349, %v1348
          %v1355 = vsel %vm381, %v1323, 0
          %v1358 = vsel %vm381, %v1324, 0
          %v1361 = vsel %vm381, %v1325, 0
          %v1364 = vsel %vm381, %v1326, 0
          %v1367 = vsel %vm381, %v1327, 0
          %v1370 = vsel %vm381, %v1328, 0
          %v1373 = vsel %vm381, %v1329, 0
          %v1376 = vsel %vm381, %v1330, 0
          %1378 = vmatprep.subr.bf16.mxu0 0
          %1379 = vmatpush1.bf16.msra.mxu0 %v1350
          %1380 = vmatprep.subr.bf16.mxu0 0
          %1381 = vmatpush1.bf16.msra.mxu0 %v1351
          %1382 = vmatprep.subr.bf16.mxu0 0
          %1383 = vmatpush1.bf16.msra.mxu0 0
          %1384 = vmatprep.subr.bf16.mxu0 0
          %1385 = vmatpush1.bf16.msra.mxu0 0
          %1386 = vmatprep.subr.bf16.mxu0 0
          %1387 = vmatpush1.bf16.msra.mxu0 0
          %1388 = vmatprep.subr.bf16.mxu0 0
          %1389 = vmatpush1.bf16.msra.mxu0 0
          %1390 = vmatprep.subr.bf16.mxu0 0
          %1391 = vmatpush1.bf16.msra.mxu0 0
          %1392 = vmatprep.subr.bf16.mxu0 0
          %1393 = vmatpush1.bf16.msra.mxu0 0
          %1394 = vmatprep.subr.bf16.mxu0 0
          %1395 = vmatpush1.bf16.msra.mxu0 0
          %1396 = vmatprep.subr.bf16.mxu0 0
          %1397 = vmatpush1.bf16.msra.mxu0 0
          %1398 = vmatprep.subr.bf16.mxu0 0
          %1399 = vmatpush1.bf16.msra.mxu0 0
          %1400 = vmatprep.subr.bf16.mxu0 0
          %1401 = vmatpush1.bf16.msra.mxu0 0
          %1402 = vmatprep.subr.bf16.mxu0 0
          %1403 = vmatpush1.bf16.msra.mxu0 0
          %1404 = vmatprep.subr.bf16.mxu0 0
          %1405 = vmatpush1.bf16.msra.mxu0 0
          %1406 = vmatprep.subr.bf16.mxu0 0
          %1407 = vmatpush1.bf16.msra.mxu0 0
          %1408 = vmatprep.subr.bf16.mxu0 0
          %1409 = vmatpush1.bf16.msra.mxu0 0
          %1410 = vmatprep.mubr.bf16.mxu0 0
          %1411 = vmatmul.mubr.bf16.gmra.mrb[0].mxu0 %v1355
          %v1412 = vpop.f32.mrb[0].mxu0
          %v1413 = vadd.f32 %v1340, %v1412
          %v1414 = vpop.f32.mrb[0].mxu0
          %v1415 = vpop.f32.mrb[0].mxu0
          %v1416 = vadd.f32 %v1340, %v1415
          %v1417 = vpop.f32.mrb[0].mxu0
          %1418 = vmatprep.mubr.bf16.mxu0 0
          %1419 = vmatmul.mubr.bf16.gmra.mrb[0].mxu0 %v1358
          %v1420 = vpop.f32.mrb[0].mxu0
          %v1421 = vadd.f32 %v1340, %v1420
          %v1422 = vpop.f32.mrb[0].mxu0
          %v1423 = vpop.f32.mrb[0].mxu0
          %v1424 = vadd.f32 %v1340, %v1423
          %v1425 = vpop.f32.mrb[0].mxu0
          %1426 = vmatprep.mubr.bf16.mxu0 0
          %1427 = vmatmul.mubr.bf16.gmra.mrb[0].mxu0 %v1361
          %v1428 = vpop.f32.mrb[0].mxu0
          %v1429 = vadd.f32 %v1340, %v1428
          %v1430 = vpop.f32.mrb[0].mxu0
          %v1431 = vpop.f32.mrb[0].mxu0
          %v1432 = vadd.f32 %v1340, %v1431
          %v1433 = vpop.f32.mrb[0].mxu0
          %1434 = vmatprep.mubr.bf16.mxu0 0
          %1435 = vmatmul.mubr.bf16.gmra.mrb[0].mxu0 %v1364
          %v1436 = vpop.f32.mrb[0].mxu0
          %v1437 = vadd.f32 %v1340, %v1436
          %v1438 = vpop.f32.mrb[0].mxu0
          %v1439 = vpop.f32.mrb[0].mxu0
          %v1440 = vadd.f32 %v1340, %v1439
          %v1441 = vpop.f32.mrb[0].mxu0
          %1442 = vmatprep.mubr.bf16.mxu0 0
          %1443 = vmatmul.mubr.bf16.gmra.mrb[0].mxu0 %v1367
          %v1444 = vpop.f32.mrb[0].mxu0
          %v1445 = vadd.f32 %v1340, %v1444
          %v1446 = vpop.f32.mrb[0].mxu0
          %v1447 = vpop.f32.mrb[0].mxu0
          %v1448 = vadd.f32 %v1340, %v1447
          %v1449 = vpop.f32.mrb[0].mxu0
          %1450 = vmatprep.mubr.bf16.mxu0 0
          %1451 = vmatmul.mubr.bf16.gmra.mrb[0].mxu0 %v1370
          %v1452 = vpop.f32.mrb[0].mxu0
          %v1453 = vadd.f32 %v1340, %v1452
          %v1454 = vpop.f32.mrb[0].mxu0
          %v1455 = vpop.f32.mrb[0].mxu0
          %v1456 = vadd.f32 %v1340, %v1455
          %v1457 = vpop.f32.mrb[0].mxu0
          %1458 = vmatprep.mubr.bf16.mxu0 0
          %1459 = vmatmul.mubr.bf16.gmra.mrb[0].mxu0 %v1373
          %v1460 = vpop.f32.mrb[0].mxu0
          %v1461 = vadd.f32 %v1340, %v1460
          %v1462 = vpop.f32.mrb[0].mxu0
          %v1463 = vpop.f32.mrb[0].mxu0
          %v1464 = vadd.f32 %v1340, %v1463
          %v1465 = vpop.f32.mrb[0].mxu0
          %1466 = vmatprep.mubr.bf16.mxu0 0
          %1467 = vmatmul.mubr.bf16.gmra.mrb[0].mxu0 %v1376
          %v1468 = vpop.f32.mrb[0].mxu0
          %v1469 = vadd.f32 %v1340, %v1468
          %v1470 = vpop.f32.mrb[0].mxu0
          %v1471 = vpop.f32.mrb[0].mxu0
          %v1472 = vadd.f32 %v1340, %v1471
          %v1473 = vpop.f32.mrb[0].mxu0
          %1474 = vdwg.mxu0
          %1475 = vst [vmem:[#allocation3] sm:$0xff] %v1413
          %1476 = vst [vmem:[#allocation3 + $0x8] sm:$0xff] %v1416
          %1477 = vst [vmem:[#allocation3 + $0x10] sm:$0xff] %v1421
          %1478 = vst [vmem:[#allocation3 + $0x18] sm:$0xff] %v1424
          %1479 = vst [vmem:[#allocation3 + $0x20] sm:$0xff] %v1429
          %1480 = vst [vmem:[#allocation3 + $0x28] sm:$0xff] %v1432
          %1481 = vst [vmem:[#allocation3 + $0x30] sm:$0xff] %v1437
          %1482 = vst [vmem:[#allocation3 + $0x38] sm:$0xff] %v1440
          %1483 = vst [vmem:[#allocation3 + $0x40] sm:$0xff] %v1445
          %1484 = vst [vmem:[#allocation3 + $0x48] sm:$0xff] %v1448
          %1485 = vst [vmem:[#allocation3 + $0x50] sm:$0xff] %v1453
          %1486 = vst [vmem:[#allocation3 + $0x58] sm:$0xff] %v1456
          %1487 = vst [vmem:[#allocation3 + $0x60] sm:$0xff] %v1461
          %1488 = vst [vmem:[#allocation3 + $0x68] sm:$0xff] %v1464
          %1489 = vst [vmem:[#allocation3 + $0x70] sm:$0xff] %v1469
          %1490 = vst [vmem:[#allocation3 + $0x78] sm:$0xff] %v1472
        $region52: #{tpu_custom_call.1} parent=43 // pred_fallthru
          _
        // Predicated region
        $region53: #{tpu_custom_call.1} parent=43 // pred_check
          %p1491 = pneg %p172
        $region54: #{tpu_custom_call.1} parent=43 // pred_check_branch
          %1493 = sbr.rel (%p1491) target = $region56
        $region55: #{tpu_custom_call.1} parent=43 // pred_region
          %s1495 = ssub.s32 2048, 2048
          %1496 = vsyncadd [#allocation4], %s1495
          %s1497 = sshll.u32 [#allocation3], 4
          %s1498 = int_to_ptr.vmem [resolvable:$true] %s1497
          %1503 = dma.vmem_to_hbm [thread:$0]  %s1498, 2048, %s6, [#allocation4], 128, 128, 8
        $region56: #{tpu_custom_call.1} parent=43 // pred_fallthru
          _
        // Predicated region
        $region57: #{tpu_custom_call.1} parent=43 // pred_check
          %p1504 = pneg %p172
        $region58: #{tpu_custom_call.1} parent=43 // pred_check_branch
          %1506 = sbr.rel (%p1504) target = $region60
        $region59: #{tpu_custom_call.1} parent=43 // pred_region
          %1507 = dma.done [#allocation4], 2048
        $region60: #{tpu_custom_call.1} parent=43 // pred_fallthru
          _
      $region44: #{tpu_custom_call.1} parent=5 // pred_fallthru
        _
      %p1508 = scmp.le.s32.totalorder 2, %s13
      // Predicated region
      $region61: #{tpu_custom_call.1} parent=5 // pred_check
        %p1509 = pneg %p1508
      $region62: #{tpu_custom_call.1} parent=5 // pred_check_branch
        %1511 = sbr.rel (%p1509) target = $region64
      $region63: #{tpu_custom_call.1} parent=5 // pred_region
        %s1512 = ssub.s32 %s13, 2
      $region64: #{tpu_custom_call.1} parent=5 // pred_fallthru
        _
    $region6: #{tpu_custom_call.1} parent=1 // loop_footer
      %s17 = sadd.s32 1, %s13
    $region7: #{tpu_custom_call.1} parent=1 // loop_footer_branch
      %12 = sbr.rel target = $region3
    $region8: #{tpu_custom_call.1} parent=1 // loop_exit
      _
    %1513 = vsyncpa [#allocation4], 1
    %s1514 = scalar_lea.sflag [#allocation4], 1
    %1515 = vsyncpa %s1514, 1

</llo_original>
